<compile_context>
chip_gen: v5e
topology: v5e:2x2
jax: 0.10.0
libtpu: 0.0.40
codegen_flags: <defaults>
</compile_context>

<pallas_src>
import jax
import jax.numpy as jnp
from jax import lax
from jax.experimental import pallas as pl
from jax.experimental.pallas import tpu as pltpu

LANE = 128


def _round_up(x, m):
    return ((x + m - 1) // m) * m


def _pad2(x, shape):
    return jnp.pad(x, [(0, s - d) for s, d in zip(shape, x.shape)])


def _choose_tiles(n_p):
    """Largest 128-multiple tiles dividing n_p; keep >=2 row tiles (v7x megacore)."""
    divs = [t for t in (512, 256, 128) if n_p % t == 0]
    tk = divs[0]                                        # K tile: 256/512-aligned when possible
    tm = next((t for t in divs if n_p // t >= 2), divs[-1])
    return tm, tk


# -------- fused kernel: (X @ W1) projection + A_norm aggregation + BN/tanh + readout --------

def _make_gcn_kernel(x_resident, tk):
    def gcn_kernel(a_ref, x_ref, w1_ref, s_ref, b1_ref,
                   wr1_ref, br1_ref, wr2_ref, br2_ref,
                   out_ref, acc_ref):
        k = pl.program_id(1)

        @pl.when(k == 0)
        def _():
            acc_ref[...] = jnp.zeros_like(acc_ref)

        # projection slab: xw_slab = X[k*tk:(k+1)*tk, :] @ W1   (bf16 x bf16 -> f32)
        if x_resident:
            start = pl.multiple_of(k * tk, tk)
            x_slab = x_ref[pl.ds(start, tk), :]
        else:
            x_slab = x_ref[...]
        xw = jnp.dot(x_slab, w1_ref[...], preferred_element_type=jnp.float32)

        # streaming bf16 x bf16 -> f32 accumulate of A_tile @ XW_slab on the MXU
        acc_ref[...] += jnp.dot(a_ref[...], xw.astype(jnp.bfloat16),
                                preferred_element_type=jnp.float32)

        @pl.when(k == pl.num_programs(1) - 1)
        def _():
            # BatchNorm (running stats) as per-channel scale/shift, then tanh
            h = jnp.tanh(acc_ref[...] * s_ref[...] + b1_ref[...])
            # readout: Linear(H,32) -> Dropout(p=0.1, inference => id) -> Tanh -> Linear(32,out)
            z = jnp.tanh(jnp.dot(h.astype(jnp.bfloat16), wr1_ref[...],
                                 preferred_element_type=jnp.float32) + br1_ref[...])
            out_ref[...] = (jnp.dot(z.astype(jnp.bfloat16), wr2_ref[...],
                                    preferred_element_type=jnp.float32)
                            + br2_ref[...]).astype(out_ref.dtype)
    return gcn_kernel


def gcn_fused(a_p, x_p, w1_p, s_p, b1_p, wr1_p, br1_p, wr2_p, br2_p,
              *, tm, tk, x_resident):
    n_p = a_p.shape[0]
    cin_p = x_p.shape[1]
    h_p = w1_p.shape[1]
    mid_p = wr1_p.shape[1]
    out_p = wr2_p.shape[1]
    n_row = n_p // tm
    n_k = n_p // tk

    if x_resident:
        # whole padded X lives in VMEM as one constant-index block (fetched once)
        x_spec = pl.BlockSpec((n_p, cin_p), lambda i, k: (0, 0))
        x_bytes = n_p * cin_p * 2
    else:
        # stream K-slabs; re-stream factor is cin_p/tm (<= 0.25 at tm>=512)
        x_spec = pl.BlockSpec((tk, cin_p), lambda i, k: (k, 0))
        x_bytes = n_row * n_p * cin_p * 2

    flops = (2 * n_p * n_p * h_p                          # A @ XW
             + 2 * n_row * n_p * cin_p * h_p              # per-row-tile XW recompute
             + 2 * n_p * (h_p * mid_p + mid_p * out_p))   # readout MLP
    bytes_accessed = (n_p * n_p * 2                       # A tiles (bf16)
                      + x_bytes                           # X (bf16)
                      + (cin_p * h_p + h_p * mid_p + mid_p * out_p) * 2
                      + n_p * out_p * 4)                  # lane-dense output
    transcendentals = n_p * (h_p + mid_p)                 # tanh

    return pl.pallas_call(
        _make_gcn_kernel(x_resident, tk),
        out_shape=jax.ShapeDtypeStruct((n_p, out_p), jnp.float32),
        grid_spec=pltpu.PrefetchScalarGridSpec(
            num_scalar_prefetch=0,
            grid=(n_row, n_k),                            # (row tiles, K reduction)
            in_specs=[
                pl.BlockSpec((tm, tk), lambda i, k: (i, k)),       # A tile (bf16)
                x_spec,                                            # X (bf16)
                pl.BlockSpec((cin_p, h_p), lambda i, k: (0, 0)),   # W1 (bf16, resident)
                pl.BlockSpec((1, h_p), lambda i, k: (0, 0)),       # BN scale (f32)
                pl.BlockSpec((1, h_p), lambda i, k: (0, 0)),       # BN-folded bias (f32)
                pl.BlockSpec((h_p, mid_p), lambda i, k: (0, 0)),   # wr1 (bf16)
                pl.BlockSpec((1, mid_p), lambda i, k: (0, 0)),     # br1 (f32)
                pl.BlockSpec((mid_p, out_p), lambda i, k: (0, 0)), # wr2 (bf16)
                pl.BlockSpec((1, out_p), lambda i, k: (0, 0)),     # br2 (f32)
            ],
            out_specs=pl.BlockSpec((tm, out_p), lambda i, k: (i, 0)),
            scratch_shapes=[pltpu.VMEM((tm, h_p), jnp.float32)],
        ),
        compiler_params=pltpu.CompilerParams(
            dimension_semantics=("parallel", "arbitrary"),
            vmem_limit_bytes=32 * 1024 * 1024),
        cost_estimate=pl.CostEstimate(flops=flops,
                                      transcendentals=transcendentals,
                                      bytes_accessed=bytes_accessed),
    )(a_p, x_p, w1_p, s_p, b1_p, wr1_p, br1_p, wr2_p, br2_p)


# --------------------------------- wrapper -----------------------------------

def netgcn_forward(x, a_norm, params):
    n, cin = x.shape
    hidden = params["w1"].shape[1]
    mid = params["wr1"].shape[1]
    out_c = params["wr2"].shape[1]

    # BatchNorm1d (inference, running stats) as a finalize-step scale/shift
    s = params["gamma"] * lax.rsqrt(params["var"] + 1e-5)
    b1_eff = (params["b1"] - params["mean"]) * s + params["beta"]

    # lane-dense padded widths
    cin_p = _round_up(max(cin, LANE), LANE)
    h_p = _round_up(max(hidden, LANE), LANE)
    mid_p = _round_up(max(mid, LANE), LANE)
    out_p = _round_up(max(out_c, LANE), LANE)
    n_p = _round_up(n, LANE)                     # only 128-align: no big-tile padding blowup
    tm, tk = _choose_tiles(n_p)

    # Resident X (fetched once) when it comfortably fits VMEM incl. double buffer
    # (~8 MiB budget keeps headroom on v7x's 64 MiB VMEM); else stream K-slabs.
    x_resident = n_p * cin_p * 2 * 2 <= 8 * 1024 * 1024

    # padded / dtype-narrowed operands (bf16 on the bandwidth-bound path)
    a_p = _pad2(a_norm, (n_p, n_p)).astype(jnp.bfloat16)
    x_p = _pad2(x, (n_p, cin_p)).astype(jnp.bfloat16)
    w1_p = _pad2(params["w1"], (cin_p, h_p)).astype(jnp.bfloat16)
    s_p = _pad2(s, (1, h_p))
    b1_p = _pad2(b1_eff, (1, h_p))
    wr1_p = _pad2(params["wr1"], (h_p, mid_p)).astype(jnp.bfloat16)
    br1_p = _pad2(params["br1"], (1, mid_p))
    wr2_p = _pad2(params["wr2"], (mid_p, out_p)).astype(jnp.bfloat16)
    br2_p = _pad2(params["br2"], (1, out_p))

    out_pad = gcn_fused(a_p, x_p, w1_p, s_p, b1_p, wr1_p, br1_p, wr2_p, br2_p,
                        tm=tm, tk=tk, x_resident=x_resident)   # [n_p, out_p] f32
    return out_pad[:n, :out_c]


# ------------------------------ host-side glue --------------------------------

def build_norm_adj(edge_index, num_nodes):
    """Dense D^{-1/2} (A + I) D^{-1/2}, matching PyG gcn_norm(add_self_loops=True)."""
    src, dst = edge_index[0], edge_index[1]
    loop = jnp.arange(num_nodes, dtype=src.dtype)
    src = jnp.concatenate([src, loop])
    dst = jnp.concatenate([dst, loop])
    adj = jnp.zeros((num_nodes, num_nodes), jnp.float32).at[dst, src].add(1.0)
    deg = adj.sum(axis=1)
    dinv = jnp.where(deg > 0, 1.0 / jnp.sqrt(deg), 0.0)
    return dinv[:, None] * adj * dinv[None, :]


def init_params(key, in_channels, hidden_channels, out_channels):
    ks = jax.random.split(key, 10)
    u = lambda k, shape, s: jax.random.uniform(k, shape, jnp.float32, -s, s)
    return {
        # GCNConv weight (PyG Linear weight is [H, Cin]) -> stored transposed [Cin, H]
        "w1":    u(ks[0], (in_channels, hidden_channels), 0.5),
        "b1":    u(ks[1], (1, hidden_channels), 0.5),
        # BatchNorm1d(hidden) affine + running stats
        "gamma": 1.0 + 0.1 * u(ks[2], (1, hidden_channels), 1.0),
        "beta":  u(ks[3], (1, hidden_channels), 0.1),
        "mean":  u(ks[4], (1, hidden_channels), 0.1),
        "var":   1.0 + 0.1 * jnp.abs(u(ks[5], (1, hidden_channels), 1.0)),
        # readout Linear(hidden, 32) and Linear(32, out), stored transposed
        "wr1":   u(ks[6], (hidden_channels, 32), 0.3),
        "br1":   u(ks[7], (1, 32), 0.3),
        "wr2":   u(ks[8], (32, out_channels), 0.3),
        "br2":   u(ks[9], (1, out_channels), 0.3),
    }


def netgcn_reference(x, a_norm, params):
    """Pure-JAX reference applying the same bf16 quantization as the kernel."""
    q = lambda a: a.astype(jnp.bfloat16).astype(jnp.float32)
    s = params["gamma"] * lax.rsqrt(params["var"] + 1e-5)
    b1_eff = (params["b1"] - params["mean"]) * s + params["beta"]
    xw = q(q(x) @ q(params["w1"]))
    h = jnp.tanh((q(a_norm) @ xw) * s + b1_eff)
    z = jnp.tanh(q(h) @ q(params["wr1"]) + params["br1"])
    return q(z) @ q(params["wr2"]) + params["br2"]


if __name__ == "__main__":
    num_nodes, in_channels, hidden_channels, out_channels = 256, 4, 8, 3

    key = jax.random.PRNGKey(0)
    k_x, k_p = jax.random.split(key)

    # node features
    x = jax.random.normal(k_x, (num_nodes, in_channels), jnp.float32)

    # simple bidirectional ring graph: edge_index shape [2, 2*N]
    idx = jnp.arange(num_nodes, dtype=jnp.int32)
    nxt = (idx + 1) % num_nodes
    edge_index = jnp.stack([jnp.concatenate([idx, nxt]),
                            jnp.concatenate([nxt, idx])], axis=0)

    a_norm = build_norm_adj(edge_index, num_nodes)
    params = init_params(k_p, in_channels, hidden_channels, out_channels)

    out = netgcn_forward(x, a_norm, params)
    out = jax.block_until_ready(out)
    assert out.shape == (num_nodes, out_channels)
    assert bool(jnp.all(jnp.isfinite(out)))

    ref = netgcn_reference(x, a_norm, params)
    assert float(jnp.max(jnp.abs(out - ref))) < 1e-2
    print("KERNEL_OK")
</pallas_src>

<mosaic_0001>
module attributes {stable_mosaic.version = 11 : i64} {
  func.func @gcn_kernel(%arg0: i32, %arg1: i32, %arg2: memref<128x256xbf16, #tpu.memory_space<vmem>>, %arg3: memref<256x128xbf16, #tpu.memory_space<vmem>>, %arg4: memref<128x128xbf16, #tpu.memory_space<vmem>>, %arg5: memref<1x128xf32, #tpu.memory_space<vmem>>, %arg6: memref<1x128xf32, #tpu.memory_space<vmem>>, %arg7: memref<128x128xbf16, #tpu.memory_space<vmem>>, %arg8: memref<1x128xf32, #tpu.memory_space<vmem>>, %arg9: memref<128x128xbf16, #tpu.memory_space<vmem>>, %arg10: memref<1x128xf32, #tpu.memory_space<vmem>>, %arg11: memref<128x128xf32, #tpu.memory_space<vmem>>, %arg12: memref<128x128xf32, #tpu.memory_space<vmem>>) attributes {dimension_semantics = [#tpu.dimension_semantics<parallel>, #tpu.dimension_semantics<arbitrary>], iteration_bounds = array<i64: 2, 1>, scalar_prefetch = 0 : i64, scratch_operands = 1 : i64, tpu.core_type = #tpu.core_type<tc>, window_params = [{transform_indices = @transform_0, window_bounds = array<i64: 128, 256>}, {pipeline_mode = #tpu.pipeline_mode<synchronous>, transform_indices = @transform_1, window_bounds = array<i64: 256, 128>}, {pipeline_mode = #tpu.pipeline_mode<synchronous>, transform_indices = @transform_2, window_bounds = array<i64: 128, 128>}, {pipeline_mode = #tpu.pipeline_mode<synchronous>, transform_indices = @transform_3, window_bounds = array<i64: 1, 128>}, {pipeline_mode = #tpu.pipeline_mode<synchronous>, transform_indices = @transform_4, window_bounds = array<i64: 1, 128>}, {pipeline_mode = #tpu.pipeline_mode<synchronous>, transform_indices = @transform_5, window_bounds = array<i64: 128, 128>}, {pipeline_mode = #tpu.pipeline_mode<synchronous>, transform_indices = @transform_6, window_bounds = array<i64: 1, 128>}, {pipeline_mode = #tpu.pipeline_mode<synchronous>, transform_indices = @transform_7, window_bounds = array<i64: 128, 128>}, {pipeline_mode = #tpu.pipeline_mode<synchronous>, transform_indices = @transform_8, window_bounds = array<i64: 1, 128>}, {transform_indices = @transform_9, window_bounds = array<i64: 128, 128>}]} {
    %c0_i32 = arith.constant 0 : i32
    %0 = arith.cmpi eq, %arg1, %c0_i32 : i32
    %1 = arith.extui %0 : i1 to i32
    %c0_i32_0 = arith.constant 0 : i32
    %2 = arith.cmpi ne, %1, %c0_i32_0 : i32
    scf.if %2 {
      %cst_12 = arith.constant 0.000000e+00 : f32
      %18 = vector.broadcast %cst_12 : f32 to vector<128x128xf32>
      %c0_13 = arith.constant 0 : index
      %c0_14 = arith.constant 0 : index
      %19 = vector.load %arg12[%c0_13, %c0_14] : memref<128x128xf32, #tpu.memory_space<vmem>>, vector<128x128xf32>
      tpu.vector_store %arg12[%c0_13, %c0_14], %18 {strides = array<i32>} : memref<128x128xf32, #tpu.memory_space<vmem>>, vector<128x128xf32>,
    } else {
    }
    %c256_i32 = arith.constant 256 : i32
    %3 = arith.muli %arg1, %c256_i32 : i32
    %4 = tpu.assume_multiple %3, 256 : i32
    %5 = arith.index_cast %4 : i32 to index
    %c0 = arith.constant 0 : index
    %6 = vector.load %arg3[%5, %c0] : memref<256x128xbf16, #tpu.memory_space<vmem>>, vector<256x128xbf16>
    %c0_1 = arith.constant 0 : index
    %c0_2 = arith.constant 0 : index
    %7 = vector.load %arg4[%c0_1, %c0_2] : memref<128x128xbf16, #tpu.memory_space<vmem>>, vector<128x128xbf16>
    %cst = arith.constant dense<0.000000e+00> : vector<256x128xf32>
    %8 = tpu.matmul %6, %7, %cst {dimension_numbers = #tpu.dot_dimension_numbers<[1], [0], [0], [1], [0, 0, 1, 1], [], []>} : vector<256x128xbf16>, vector<128x128xbf16>, vector<256x128xf32> -> vector<256x128xf32>
    %c0_3 = arith.constant 0 : index
    %c0_4 = arith.constant 0 : index
    %9 = vector.load %arg12[%c0_3, %c0_4] : memref<128x128xf32, #tpu.memory_space<vmem>>, vector<128x128xf32>
    %c0_5 = arith.constant 0 : index
    %c0_6 = arith.constant 0 : index
    %10 = vector.load %arg2[%c0_5, %c0_6] : memref<128x256xbf16, #tpu.memory_space<vmem>>, vector<128x256xbf16>
    %11 = arith.truncf %8 : vector<256x128xf32> to vector<256x128xbf16>
    %cst_7 = arith.constant dense<0.000000e+00> : vector<128x128xf32>
    %12 = tpu.matmul %10, %11, %cst_7 {dimension_numbers = #tpu.dot_dimension_numbers<[1], [0], [0], [1], [0, 0, 1, 1], [], []>} : vector<128x256xbf16>, vector<256x128xbf16>, vector<128x128xf32> -> vector<128x128xf32>
    %13 = arith.addf %9, %12 : vector<128x128xf32>
    %c0_8 = arith.constant 0 : index
    %c0_9 = arith.constant 0 : index
    %14 = vector.load %arg12[%c0_8, %c0_9] : memref<128x128xf32, #tpu.memory_space<vmem>>, vector<128x128xf32>
    tpu.vector_store %arg12[%c0_8, %c0_9], %13 {strides = array<i32>} : memref<128x128xf32, #tpu.memory_space<vmem>>, vector<128x128xf32>,
    %c0_i32_10 = arith.constant 0 : i32
    %15 = arith.cmpi eq, %arg1, %c0_i32_10 : i32
    %16 = arith.extui %15 : i1 to i32
    %c0_i32_11 = arith.constant 0 : i32
    %17 = arith.cmpi ne, %16, %c0_i32_11 : i32
    scf.if %17 {
      %c0_12 = arith.constant 0 : index
      %c0_13 = arith.constant 0 : index
      %18 = vector.load %arg12[%c0_12, %c0_13] : memref<128x128xf32, #tpu.memory_space<vmem>>, vector<128x128xf32>
      %c0_14 = arith.constant 0 : index
      %c0_15 = arith.constant 0 : index
      %19 = vector.load %arg5[%c0_14, %c0_15] : memref<1x128xf32, #tpu.memory_space<vmem>>, vector<1x128xf32>
      %20 = vector.broadcast %19 : vector<1x128xf32> to vector<128x128xf32>
      %21 = arith.mulf %18, %20 : vector<128x128xf32>
      %c0_16 = arith.constant 0 : index
      %c0_17 = arith.constant 0 : index
      %22 = vector.load %arg6[%c0_16, %c0_17] : memref<1x128xf32, #tpu.memory_space<vmem>>, vector<1x128xf32>
      %23 = vector.broadcast %22 : vector<1x128xf32> to vector<128x128xf32>
      %24 = arith.addf %21, %23 : vector<128x128xf32>
      %25 = math.tanh %24 : vector<128x128xf32>
      %26 = arith.truncf %25 : vector<128x128xf32> to vector<128x128xbf16>
      %c0_18 = arith.constant 0 : index
      %c0_19 = arith.constant 0 : index
      %27 = vector.load %arg7[%c0_18, %c0_19] : memref<128x128xbf16, #tpu.memory_space<vmem>>, vector<128x128xbf16>
      %cst_20 = arith.constant dense<0.000000e+00> : vector<128x128xf32>
      %28 = tpu.matmul %26, %27, %cst_20 {dimension_numbers = #tpu.dot_dimension_numbers<[1], [0], [0], [1], [0, 0, 1, 1], [], []>} : vector<128x128xbf16>, vector<128x128xbf16>, vector<128x128xf32> -> vector<128x128xf32>
      %c0_21 = arith.constant 0 : index
      %c0_22 = arith.constant 0 : index
      %29 = vector.load %arg8[%c0_21, %c0_22] : memref<1x128xf32, #tpu.memory_space<vmem>>, vector<1x128xf32>
      %30 = vector.broadcast %29 : vector<1x128xf32> to vector<128x128xf32>
      %31 = arith.addf %28, %30 : vector<128x128xf32>
      %32 = math.tanh %31 : vector<128x128xf32>
      %33 = arith.truncf %32 : vector<128x128xf32> to vector<128x128xbf16>
      %c0_23 = arith.constant 0 : index
      %c0_24 = arith.constant 0 : index
      %34 = vector.load %arg9[%c0_23, %c0_24] : memref<128x128xbf16, #tpu.memory_space<vmem>>, vector<128x128xbf16>
      %cst_25 = arith.constant dense<0.000000e+00> : vector<128x128xf32>
      %35 = tpu.matmul %33, %34, %cst_25 {dimension_numbers = #tpu.dot_dimension_numbers<[1], [0], [0], [1], [0, 0, 1, 1], [], []>} : vector<128x128xbf16>, vector<128x128xbf16>, vector<128x128xf32> -> vector<128x128xf32>
      %c0_26 = arith.constant 0 : index
      %c0_27 = arith.constant 0 : index
      %36 = vector.load %arg10[%c0_26, %c0_27] : memref<1x128xf32, #tpu.memory_space<vmem>>, vector<1x128xf32>
      %37 = vector.broadcast %36 : vector<1x128xf32> to vector<128x128xf32>
      %38 = arith.addf %35, %37 : vector<128x128xf32>
      %c0_28 = arith.constant 0 : index
      %c0_29 = arith.constant 0 : index
      %39 = vector.load %arg11[%c0_28, %c0_29] : memref<128x128xf32, #tpu.memory_space<vmem>>, vector<128x128xf32>
      tpu.vector_store %arg11[%c0_28, %c0_29], %38 {strides = array<i32>} : memref<128x128xf32, #tpu.memory_space<vmem>>, vector<128x128xf32>,
    } else {
    }
    return
  }
  func.func @transform_0(%arg0: i32, %arg1: i32) -> (i32, i32) {
    %c0_i32 = arith.constant 0 : i32
    return %arg0, %arg1 : i32, i32
  }
  func.func @transform_1(%arg0: i32, %arg1: i32) -> (i32, i32) {
    %c0_i32 = arith.constant 0 : i32
    %c0_i32_0 = arith.constant 0 : i32
    %c0_i32_1 = arith.constant 0 : i32
    return %c0_i32, %c0_i32_0 : i32, i32
  }
  func.func @transform_2(%arg0: i32, %arg1: i32) -> (i32, i32) {
    %c0_i32 = arith.constant 0 : i32
    %c0_i32_0 = arith.constant 0 : i32
    %c0_i32_1 = arith.constant 0 : i32
    return %c0_i32, %c0_i32_0 : i32, i32
  }
  func.func @transform_3(%arg0: i32, %arg1: i32) -> (i32, i32) {
    %c0_i32 = arith.constant 0 : i32
    %c0_i32_0 = arith.constant 0 : i32
    %c0_i32_1 = arith.constant 0 : i32
    return %c0_i32, %c0_i32_0 : i32, i32
  }
  func.func @transform_4(%arg0: i32, %arg1: i32) -> (i32, i32) {
    %c0_i32 = arith.constant 0 : i32
    %c0_i32_0 = arith.constant 0 : i32
    %c0_i32_1 = arith.constant 0 : i32
    return %c0_i32, %c0_i32_0 : i32, i32
  }
  func.func @transform_5(%arg0: i32, %arg1: i32) -> (i32, i32) {
    %c0_i32 = arith.constant 0 : i32
    %c0_i32_0 = arith.constant 0 : i32
    %c0_i32_1 = arith.constant 0 : i32
    return %c0_i32, %c0_i32_0 : i32, i32
  }
  func.func @transform_6(%arg0: i32, %arg1: i32) -> (i32, i32) {
    %c0_i32 = arith.constant 0 : i32
    %c0_i32_0 = arith.constant 0 : i32
    %c0_i32_1 = arith.constant 0 : i32
    return %c0_i32, %c0_i32_0 : i32, i32
  }
  func.func @transform_7(%arg0: i32, %arg1: i32) -> (i32, i32) {
    %c0_i32 = arith.constant 0 : i32
    %c0_i32_0 = arith.constant 0 : i32
    %c0_i32_1 = arith.constant 0 : i32
    return %c0_i32, %c0_i32_0 : i32, i32
  }
  func.func @transform_8(%arg0: i32, %arg1: i32) -> (i32, i32) {
    %c0_i32 = arith.constant 0 : i32
    %c0_i32_0 = arith.constant 0 : i32
    %c0_i32_1 = arith.constant 0 : i32
    return %c0_i32, %c0_i32_0 : i32, i32
  }
  func.func @transform_9(%arg0: i32, %arg1: i32) -> (i32, i32) {
    %c0_i32 = arith.constant 0 : i32
    %c0_i32_0 = arith.constant 0 : i32
    return %arg0, %c0_i32 : i32, i32
  }
}

</mosaic_0001>

<llo_original>
// kernel: tpu_custom_call.1
$region0: #{tpu_custom_call.1}
  #allocation0 [shape = 'u32[]', space=smem, size = 0x4, offset = 0x4, fixed_abs, tag = 'smem constant byte address 0x4 - core index']
  #allocation1 [shape = 'u32[72,128]{1,0:T(1,128)}', space=vmem, size = 0x9000, scoped, tag = 'internal scratch']
  #allocation2 [shape = 'f32[128,128]{1,0:T(8,128)}', space=vmem, size = 0x10000, scoped, tag = 'scratch operand']
  %s0 = inlined_call_operand.hbm [shape: bf16[256,256], index: 0, kind: input, shape index: {}]
  %s1 = inlined_call_operand.hbm [shape: bf16[256,128], index: 1, kind: input, shape index: {}]
  %s2 = inlined_call_operand.hbm [shape: bf16[128,128], index: 2, kind: input, shape index: {}]
  %s3 = inlined_call_operand.vmem [shape: f32[1,128], index: 3, kind: input, shape index: {}]
  %s4 = inlined_call_operand.vmem [shape: f32[1,128], index: 4, kind: input, shape index: {}]
  %s5 = inlined_call_operand.hbm [shape: bf16[128,128], index: 5, kind: input, shape index: {}]
  %s6 = inlined_call_operand.vmem [shape: f32[1,128], index: 6, kind: input, shape index: {}]
  %s7 = inlined_call_operand.hbm [shape: bf16[128,128], index: 7, kind: input, shape index: {}]
  %s8 = inlined_call_operand.vmem [shape: f32[1,128], index: 8, kind: input, shape index: {}]
  %s9 = inlined_call_operand.hbm [shape: f32[256,128], index: 9, kind: output, shape index: {}]
  %s10 = sld [smem:[#allocation0]]
  $region97: #{tpu_custom_call.1} parent=0
    _
  %s12 = ssub.s32 1, %s10
  %s13 = scalar_select 0, %s12, %s10
  $region1: #{tpu_custom_call.1} parent=0
    #allocation3 [shape = 'u8[131072]{0}', space=vmem, size = 0x20000, scoped, tag = 'input window, operand 0']
    #allocation4 [shape = 's32[2]{0}', space=sflag, size = 0x8, scoped, tag = 'scoped memory for tpu_custom_call.1']
    #allocation5 [shape = 's32[2]{0}', space=sflag, size = 0x8, scoped, tag = 'scoped memory for tpu_custom_call.1']
    #allocation6 [shape = 'u8[65536]{0}', space=vmem, size = 0x10000, scoped, tag = 'input window, operand 1, single buffered']
    #allocation7 [shape = 's32[1]{0}', space=sflag, size = 0x4, scoped, tag = 'scoped memory for tpu_custom_call.1']
    #allocation8 [shape = 'u8[32768]{0}', space=vmem, size = 0x8000, scoped, tag = 'input window, operand 2, single buffered']
    #allocation9 [shape = 'u8[32768]{0}', space=vmem, size = 0x8000, scoped, tag = 'input window, operand 5, single buffered']
    #allocation10 [shape = 's32[1]{0}', space=sflag, size = 0x4, scoped, tag = 'scoped memory for tpu_custom_call.1']
    #allocation11 [shape = 'u8[32768]{0}', space=vmem, size = 0x8000, scoped, tag = 'input window, operand 7, single buffered']
    #allocation12 [shape = 'u8[131072]{0}', space=vmem, size = 0x20000, scoped, tag = 'output window, operand 0']
    %14 = vsyncpa [#allocation4], 0
    %s15 = scalar_lea.sflag [#allocation4], 1
    %16 = vsyncpa %s15, 0
    %17 = vsyncpa [#allocation7], 0
    %18 = vsyncpa [#allocation10], 0
    %19 = vsyncpa [#allocation5], 0
    %s20 = scalar_lea.sflag [#allocation5], 1
    %21 = vsyncpa %s20, 0
    loop: start=0, step=1, limit=4
    $region2: #{tpu_custom_call.1} parent=1 // loop_pre_header
      _
    $region3: #{tpu_custom_call.1} parent=1 // loop_header
      %s23 = sphi 0, %s27
      %p24 = scmp.ge.s32.totalorder %s23, 4
      %s30 = sphi 0, %s42
      %s31 = sphi 0, %s38
      %s32 = sphi 0, %s30
      %s33 = sphi 0, %s31
      %s34 = sphi 0, %s32
      %s35 = sphi 0, %s33
      %s47 = sphi 0, %s49
      %s50 = sphi 0, %s47
      %s51 = sphi 0, %s50
      %s67 = sphi 0, %s51
      %s71 = sphi 0, %s71
      %s73 = sphi 0, %s71
      %s74 = sphi 0, %s73
      %s88 = sphi 0, %s74
      %s92 = sphi 0, %s92
      %s94 = sphi 0, %s92
      %s95 = sphi 0, %s94
      %s109 = sphi 0, %s95
      %s113 = sphi 0, %s113
      %s115 = sphi 0, %s113
      %s116 = sphi 0, %s115
      %s130 = sphi 0, %s116
      %s134 = sphi 0, %s134
      %s136 = sphi 0, %s134
      %s137 = sphi 0, %s136
      %s151 = sphi 0, %s137
      %s155 = sphi 0, %s155
      %s157 = sphi 0, %s155
      %s158 = sphi 0, %s157
      %s172 = sphi 0, %s158
      %s176 = sphi 0, %s176
      %s178 = sphi 0, %s176
      %s179 = sphi 0, %s178
      %s193 = sphi 0, %s179
      %s197 = sphi 0, %s197
      %s199 = sphi 0, %s197
      %s200 = sphi 0, %s199
      %s214 = sphi 0, %s200
      %s218 = sphi 0, %s218
      %s220 = sphi 0, %s218
      %s221 = sphi 0, %s220
      %s235 = sphi 0, %s221
      %s241 = sphi 0, %s243
      %s244 = sphi 0, %s241
      %s245 = sphi 0, %s244
      %s261 = sphi 0, %s245
    $region4: #{tpu_custom_call.1} parent=1 // loop_header_branch
      %26 = sbr.rel (%p24) target = $region8
    $region5: #{tpu_custom_call.1} parent=1 // loop_body
      %s28 = ssub.s32 %s23, 1
      %s29 = ssub.s32 %s23, 2
      %s36 = sadd.s32 1, %s31
      %p37 = scmp.ge.s32.totalorder %s36, 1
      %s38 = scalar_select %p37, 0, %s36
      %s39 = sadd.s32 1, %s30
      %s40 = scalar_select %p37, %s39, %s30
      %p41 = scmp.ge.s32.totalorder %s40, 2
      %s42 = scalar_select %p41, 0, %s40
      %s43 = ssub.s32 %s30, %s42
      %s44 = ssub.s32 %s31, %s38
      %s45 = sor.u32 %s43, %s44
      %p46 = scmp.eq.s32.totalorder %s45, 0
      %s48 = sadd.s32 %s47, 1
      %s49 = scalar_select %p46, %s47, %s48
      %p52 = pneg %p46
      %p53 = scmp.eq.s32.totalorder %s23, 1
      %p54 = por %p52, %p53
      %p55 = scmp.ne.s32.totalorder %s47, %s50
      %p56 = scmp.eq.s32.totalorder %s23, 0
      %p57 = por %p55, %p56
      %p58 = scmp.ne.s32.totalorder %s47, %s50
      %p59 = scmp.eq.s32.totalorder %s28, 1
      %p60 = por %p58, %p59
      %p61 = scmp.ne.s32.totalorder %s50, %s51
      %p62 = scmp.eq.s32.totalorder %s28, 0
      %p63 = por %p61, %p62
      %p64 = scmp.ne.s32.totalorder %s50, %s51
      %p65 = scmp.eq.s32.totalorder %s29, 1
      %p66 = por %p64, %p65
      %p68 = scmp.ne.s32.totalorder %s51, %s67
      %p69 = scmp.eq.s32.totalorder %s29, 0
      %p70 = por %p68, %p69
      %s72 = sadd.s32 %s71, 1
      %p75 = scmp.eq.s32.totalorder %s23, 1
      %p76 = scmp.ne.s32.totalorder %s71, %s73
      %p77 = scmp.eq.s32.totalorder %s23, 0
      %p78 = por %p76, %p77
      %p79 = scmp.ne.s32.totalorder %s71, %s73
      %p80 = scmp.eq.s32.totalorder %s28, 1
      %p81 = por %p79, %p80
      %p82 = scmp.ne.s32.totalorder %s73, %s74
      %p83 = scmp.eq.s32.totalorder %s28, 0
      %p84 = por %p82, %p83
      %p85 = scmp.ne.s32.totalorder %s73, %s74
      %p86 = scmp.eq.s32.totalorder %s29, 1
      %p87 = por %p85, %p86
      %p89 = scmp.ne.s32.totalorder %s74, %s88
      %p90 = scmp.eq.s32.totalorder %s29, 0
      %p91 = por %p89, %p90
      %s93 = sadd.s32 %s92, 1
      %p96 = scmp.eq.s32.totalorder %s23, 1
      %p97 = scmp.ne.s32.totalorder %s92, %s94
      %p98 = scmp.eq.s32.totalorder %s23, 0
      %p99 = por %p97, %p98
      %p100 = scmp.ne.s32.totalorder %s92, %s94
      %p101 = scmp.eq.s32.totalorder %s28, 1
      %p102 = por %p100, %p101
      %p103 = scmp.ne.s32.totalorder %s94, %s95
      %p104 = scmp.eq.s32.totalorder %s28, 0
      %p105 = por %p103, %p104
      %p106 = scmp.ne.s32.totalorder %s94, %s95
      %p107 = scmp.eq.s32.totalorder %s29, 1
      %p108 = por %p106, %p107
      %p110 = scmp.ne.s32.totalorder %s95, %s109
      %p111 = scmp.eq.s32.totalorder %s29, 0
      %p112 = por %p110, %p111
      %s114 = sadd.s32 %s113, 1
      %p117 = scmp.eq.s32.totalorder %s23, 1
      %p118 = scmp.ne.s32.totalorder %s113, %s115
      %p119 = scmp.eq.s32.totalorder %s23, 0
      %p120 = por %p118, %p119
      %p121 = scmp.ne.s32.totalorder %s113, %s115
      %p122 = scmp.eq.s32.totalorder %s28, 1
      %p123 = por %p121, %p122
      %p124 = scmp.ne.s32.totalorder %s115, %s116
      %p125 = scmp.eq.s32.totalorder %s28, 0
      %p126 = por %p124, %p125
      %p127 = scmp.ne.s32.totalorder %s115, %s116
      %p128 = scmp.eq.s32.totalorder %s29, 1
      %p129 = por %p127, %p128
      %p131 = scmp.ne.s32.totalorder %s116, %s130
      %p132 = scmp.eq.s32.totalorder %s29, 0
      %p133 = por %p131, %p132
      %s135 = sadd.s32 %s134, 1
      %p138 = scmp.eq.s32.totalorder %s23, 1
      %p139 = scmp.ne.s32.totalorder %s134, %s136
      %p140 = scmp.eq.s32.totalorder %s23, 0
      %p141 = por %p139, %p140
      %p142 = scmp.ne.s32.totalorder %s134, %s136
      %p143 = scmp.eq.s32.totalorder %s28, 1
      %p144 = por %p142, %p143
      %p145 = scmp.ne.s32.totalorder %s136, %s137
      %p146 = scmp.eq.s32.totalorder %s28, 0
      %p147 = por %p145, %p146
      %p148 = scmp.ne.s32.totalorder %s136, %s137
      %p149 = scmp.eq.s32.totalorder %s29, 1
      %p150 = por %p148, %p149
      %p152 = scmp.ne.s32.totalorder %s137, %s151
      %p153 = scmp.eq.s32.totalorder %s29, 0
      %p154 = por %p152, %p153
      %s156 = sadd.s32 %s155, 1
      %p159 = scmp.eq.s32.totalorder %s23, 1
      %p160 = scmp.ne.s32.totalorder %s155, %s157
      %p161 = scmp.eq.s32.totalorder %s23, 0
      %p162 = por %p160, %p161
      %p163 = scmp.ne.s32.totalorder %s155, %s157
      %p164 = scmp.eq.s32.totalorder %s28, 1
      %p165 = por %p163, %p164
      %p166 = scmp.ne.s32.totalorder %s157, %s158
      %p167 = scmp.eq.s32.totalorder %s28, 0
      %p168 = por %p166, %p167
      %p169 = scmp.ne.s32.totalorder %s157, %s158
      %p170 = scmp.eq.s32.totalorder %s29, 1
      %p171 = por %p169, %p170
      %p173 = scmp.ne.s32.totalorder %s158, %s172
      %p174 = scmp.eq.s32.totalorder %s29, 0
      %p175 = por %p173, %p174
      %s177 = sadd.s32 %s176, 1
      %p180 = scmp.eq.s32.totalorder %s23, 1
      %p181 = scmp.ne.s32.totalorder %s176, %s178
      %p182 = scmp.eq.s32.totalorder %s23, 0
      %p183 = por %p181, %p182
      %p184 = scmp.ne.s32.totalorder %s176, %s178
      %p185 = scmp.eq.s32.totalorder %s28, 1
      %p186 = por %p184, %p185
      %p187 = scmp.ne.s32.totalorder %s178, %s179
      %p188 = scmp.eq.s32.totalorder %s28, 0
      %p189 = por %p187, %p188
      %p190 = scmp.ne.s32.totalorder %s178, %s179
      %p191 = scmp.eq.s32.totalorder %s29, 1
      %p192 = por %p190, %p191
      %p194 = scmp.ne.s32.totalorder %s179, %s193
      %p195 = scmp.eq.s32.totalorder %s29, 0
      %p196 = por %p194, %p195
      %s198 = sadd.s32 %s197, 1
      %p201 = scmp.eq.s32.totalorder %s23, 1
      %p202 = scmp.ne.s32.totalorder %s197, %s199
      %p203 = scmp.eq.s32.totalorder %s23, 0
      %p204 = por %p202, %p203
      %p205 = scmp.ne.s32.totalorder %s197, %s199
      %p206 = scmp.eq.s32.totalorder %s28, 1
      %p207 = por %p205, %p206
      %p208 = scmp.ne.s32.totalorder %s199, %s200
      %p209 = scmp.eq.s32.totalorder %s28, 0
      %p210 = por %p208, %p209
      %p211 = scmp.ne.s32.totalorder %s199, %s200
      %p212 = scmp.eq.s32.totalorder %s29, 1
      %p213 = por %p211, %p212
      %p215 = scmp.ne.s32.totalorder %s200, %s214
      %p216 = scmp.eq.s32.totalorder %s29, 0
      %p217 = por %p215, %p216
      %s219 = sadd.s32 %s218, 1
      %p222 = scmp.eq.s32.totalorder %s23, 1
      %p223 = scmp.ne.s32.totalorder %s218, %s220
      %p224 = scmp.eq.s32.totalorder %s23, 0
      %p225 = por %p223, %p224
      %p226 = scmp.ne.s32.totalorder %s218, %s220
      %p227 = scmp.eq.s32.totalorder %s28, 1
      %p228 = por %p226, %p227
      %p229 = scmp.ne.s32.totalorder %s220, %s221
      %p230 = scmp.eq.s32.totalorder %s28, 0
      %p231 = por %p229, %p230
      %p232 = scmp.ne.s32.totalorder %s220, %s221
      %p233 = scmp.eq.s32.totalorder %s29, 1
      %p234 = por %p232, %p233
      %p236 = scmp.ne.s32.totalorder %s221, %s235
      %p237 = scmp.eq.s32.totalorder %s29, 0
      %p238 = por %p236, %p237
      %s239 = ssub.s32 %s30, %s42
      %p240 = scmp.eq.s32.totalorder %s239, 0
      %s242 = sadd.s32 %s241, 1
      %s243 = scalar_select %p240, %s241, %s242
      %p246 = pneg %p240
      %p247 = scmp.eq.s32.totalorder %s23, 1
      %p248 = por %p246, %p247
      %p249 = scmp.ne.s32.totalorder %s241, %s244
      %p250 = scmp.eq.s32.totalorder %s23, 0
      %p251 = por %p249, %p250
      %p252 = scmp.ne.s32.totalorder %s241, %s244
      %p253 = scmp.eq.s32.totalorder %s28, 1
      %p254 = por %p252, %p253
      %p255 = scmp.ne.s32.totalorder %s244, %s245
      %p256 = scmp.eq.s32.totalorder %s28, 0
      %p257 = por %p255, %p256
      %p258 = scmp.ne.s32.totalorder %s244, %s245
      %p259 = scmp.eq.s32.totalorder %s29, 1
      %p260 = por %p258, %p259
      %p262 = scmp.ne.s32.totalorder %s245, %s261
      %p263 = scmp.eq.s32.totalorder %s29, 0
      %p264 = por %p262, %p263
      %p265 = scmp.le.s32.totalorder 1, %s23
      %p266 = scmp.lt.s32.totalorder %s23, 3
      %p267 = pnand %p265, %p266
      %p268 = pneg %p267
      // Predicated region
      $region9: #{tpu_custom_call.1} parent=5 // pred_check
        _
      $region10: #{tpu_custom_call.1} parent=5 // pred_check_branch
        %270 = sbr.rel (%p267) target = $region12
      $region11: #{tpu_custom_call.1} parent=5 // pred_region
        %s271 = ssub.s32 %s23, 1
        // Predicated region
        $region13: #{tpu_custom_call.1} parent=11 // pred_check
          %p272 = pneg %p84
        $region14: #{tpu_custom_call.1} parent=11 // pred_check_branch
          %274 = sbr.rel (%p272) target = $region16
        $region15: #{tpu_custom_call.1} parent=11 // pred_region
          %276 = vsyncadd [#allocation7], 0
          %s277 = sshll.u32 %s1, 4
          %s278 = int_to_ptr.hbm [resolvable:$true] %s277
          %s279 = sshll.u32 [#allocation6], 4
          %s280 = int_to_ptr.vmem [resolvable:$true] %s279
          %285 = dma.hbm_to_vmem [thread:$0]  %s278, 2048, %s280, [#allocation7], 64, 64, 4
        $region16: #{tpu_custom_call.1} parent=11 // pred_fallthru
          _
        // Predicated region
        $region17: #{tpu_custom_call.1} parent=11 // pred_check
          %p286 = pneg %p105
        $region18: #{tpu_custom_call.1} parent=11 // pred_check_branch
          %288 = sbr.rel (%p286) target = $region20
        $region19: #{tpu_custom_call.1} parent=11 // pred_region
          %290 = vsyncadd [#allocation7], 0
          %s291 = sshll.u32 %s2, 4
          %s292 = int_to_ptr.hbm [resolvable:$true] %s291
          %s293 = sshll.u32 [#allocation8], 4
          %s294 = int_to_ptr.vmem [resolvable:$true] %s293
          %299 = dma.hbm_to_vmem [thread:$0]  %s292, 1024, %s294, [#allocation7], 64, 64, 4
        $region20: #{tpu_custom_call.1} parent=11 // pred_fallthru
          _
        // Predicated region
        $region21: #{tpu_custom_call.1} parent=11 // pred_check
          %p300 = pneg %p126
        $region22: #{tpu_custom_call.1} parent=11 // pred_check_branch
          %302 = sbr.rel (%p300) target = $region24
        $region23: #{tpu_custom_call.1} parent=11 // pred_region
          _
        $region24: #{tpu_custom_call.1} parent=11 // pred_fallthru
          _
        // Predicated region
        $region25: #{tpu_custom_call.1} parent=11 // pred_check
          %p303 = pneg %p147
        $region26: #{tpu_custom_call.1} parent=11 // pred_check_branch
          %305 = sbr.rel (%p303) target = $region28
        $region27: #{tpu_custom_call.1} parent=11 // pred_region
          _
        $region28: #{tpu_custom_call.1} parent=11 // pred_fallthru
          _
        // Predicated region
        $region29: #{tpu_custom_call.1} parent=11 // pred_check
          %p306 = pneg %p168
        $region30: #{tpu_custom_call.1} parent=11 // pred_check_branch
          %308 = sbr.rel (%p306) target = $region32
        $region31: #{tpu_custom_call.1} parent=11 // pred_region
          %310 = vsyncadd [#allocation10], 0
          %s311 = sshll.u32 %s5, 4
          %s312 = int_to_ptr.hbm [resolvable:$true] %s311
          %s313 = sshll.u32 [#allocation9], 4
          %s314 = int_to_ptr.vmem [resolvable:$true] %s313
          %319 = dma.hbm_to_vmem [thread:$0]  %s312, 1024, %s314, [#allocation10], 64, 64, 4
        $region32: #{tpu_custom_call.1} parent=11 // pred_fallthru
          _
        // Predicated region
        $region33: #{tpu_custom_call.1} parent=11 // pred_check
          %p320 = pneg %p189
        $region34: #{tpu_custom_call.1} parent=11 // pred_check_branch
          %322 = sbr.rel (%p320) target = $region36
        $region35: #{tpu_custom_call.1} parent=11 // pred_region
          _
        $region36: #{tpu_custom_call.1} parent=11 // pred_fallthru
          _
        // Predicated region
        $region37: #{tpu_custom_call.1} parent=11 // pred_check
          %p323 = pneg %p210
        $region38: #{tpu_custom_call.1} parent=11 // pred_check_branch
          %325 = sbr.rel (%p323) target = $region40
        $region39: #{tpu_custom_call.1} parent=11 // pred_region
          %327 = vsyncadd [#allocation10], 0
          %s328 = sshll.u32 %s7, 4
          %s329 = int_to_ptr.hbm [resolvable:$true] %s328
          %s330 = sshll.u32 [#allocation11], 4
          %s331 = int_to_ptr.vmem [resolvable:$true] %s330
          %336 = dma.hbm_to_vmem [thread:$0]  %s329, 1024, %s331, [#allocation10], 64, 64, 4
        $region40: #{tpu_custom_call.1} parent=11 // pred_fallthru
          _
        // Predicated region
        $region41: #{tpu_custom_call.1} parent=11 // pred_check
          %p337 = pneg %p231
        $region42: #{tpu_custom_call.1} parent=11 // pred_check_branch
          %339 = sbr.rel (%p337) target = $region44
        $region43: #{tpu_custom_call.1} parent=11 // pred_region
          _
        $region44: #{tpu_custom_call.1} parent=11 // pred_fallthru
          _
      $region12: #{tpu_custom_call.1} parent=5 // pred_fallthru
        _
      %p340 = scmp.lt.s32.totalorder %s23, 2
      // Predicated region
      $region45: #{tpu_custom_call.1} parent=5 // pred_check
        %p341 = pneg %p340
      $region46: #{tpu_custom_call.1} parent=5 // pred_check_branch
        %343 = sbr.rel (%p341) target = $region48
      $region47: #{tpu_custom_call.1} parent=5 // pred_region
        // Predicated region
        $region49: #{tpu_custom_call.1} parent=47 // pred_check
          %p344 = pneg %p57
        $region50: #{tpu_custom_call.1} parent=47 // pred_check_branch
          %346 = sbr.rel (%p344) target = $region52
        $region51: #{tpu_custom_call.1} parent=47 // pred_region
          %s347 = sand.u32 %s47, 1
          %s348 = scalar_lea.sflag [#allocation4], %s347
          %s349 = sand.u32 %s47, 1
          %s350 = smul.addr %s349, 128
          %s351 = scalar_lea.vmem [#allocation3], %s350
          %s352 = smul.u32 16, %s30
          %s353 = smul.u32 2, %s31
          %355 = vsyncadd %s348, 0
          %s356 = smul.addr %s352, 2
          %s357 = sadd.s32 %s353, %s356
          %s358 = smul.addr %s357, 4
          %s359 = scalar_lea.hbm %s0, %s358
          %s360 = sshll.u32 %s359, 4
          %s361 = int_to_ptr.hbm [resolvable:$true] %s360
          %s362 = sshll.u32 %s351, 4
          %s363 = int_to_ptr.vmem [resolvable:$true] %s362
          %368 = dma.hbm_to_vmem [thread:$0]  %s361, 2048, %s363, %s348, 128, 128, 8
        $region52: #{tpu_custom_call.1} parent=47 // pred_fallthru
          _
      $region48: #{tpu_custom_call.1} parent=5 // pred_fallthru
        _
      %p369 = scmp.le.s32.totalorder 1, %s23
      %p370 = scmp.lt.s32.totalorder %s23, 3
      %p371 = pnand %p369, %p370
      %p372 = pneg %p371
      // Predicated region
      $region53: #{tpu_custom_call.1} parent=5 // pred_check
        _
      $region54: #{tpu_custom_call.1} parent=5 // pred_check_branch
        %374 = sbr.rel (%p371) target = $region56
      $region55: #{tpu_custom_call.1} parent=5 // pred_region
        %s375 = ssub.s32 %s23, 1
        %s376 = sand.u32 %s50, 1
        %s377 = scalar_lea.sflag [#allocation4], %s376
        %s378 = sand.u32 %s50, 1
        %s379 = smul.addr %s378, 128
        %s380 = scalar_lea.vmem [#allocation3], %s379
        // Predicated region
        $region57: #{tpu_custom_call.1} parent=55 // pred_check
          %p381 = pneg %p63
        $region58: #{tpu_custom_call.1} parent=55 // pred_check_branch
          %383 = sbr.rel (%p381) target = $region60
        $region59: #{tpu_custom_call.1} parent=55 // pred_region
          %385 = dma.done %s377, 2048
        $region60: #{tpu_custom_call.1} parent=55 // pred_fallthru
          _
        // Predicated region
        $region61: #{tpu_custom_call.1} parent=55 // pred_check
          %p386 = pneg %p84
        $region62: #{tpu_custom_call.1} parent=55 // pred_check_branch
          %388 = sbr.rel (%p386) target = $region64
        $region63: #{tpu_custom_call.1} parent=55 // pred_region
          %390 = dma.done [#allocation7], 2048
        $region64: #{tpu_custom_call.1} parent=55 // pred_fallthru
          _
        // Predicated region
        $region65: #{tpu_custom_call.1} parent=55 // pred_check
          %p391 = pneg %p105
        $region66: #{tpu_custom_call.1} parent=55 // pred_check_branch
          %393 = sbr.rel (%p391) target = $region68
        $region67: #{tpu_custom_call.1} parent=55 // pred_region
          %395 = dma.done [#allocation7], 1024
        $region68: #{tpu_custom_call.1} parent=55 // pred_fallthru
          _
        // Predicated region
        $region69: #{tpu_custom_call.1} parent=55 // pred_check
          %p396 = pneg %p168
        $region70: #{tpu_custom_call.1} parent=55 // pred_check_branch
          %398 = sbr.rel (%p396) target = $region72
        $region71: #{tpu_custom_call.1} parent=55 // pred_region
          %400 = dma.done [#allocation10], 1024
        $region72: #{tpu_custom_call.1} parent=55 // pred_fallthru
          _
        // Predicated region
        $region73: #{tpu_custom_call.1} parent=55 // pred_check
          %p401 = pneg %p210
        $region74: #{tpu_custom_call.1} parent=55 // pred_check_branch
          %403 = sbr.rel (%p401) target = $region76
        $region75: #{tpu_custom_call.1} parent=55 // pred_region
          %405 = dma.done [#allocation10], 1024
        $region76: #{tpu_custom_call.1} parent=55 // pred_fallthru
          _
        %s406 = sand.u32 %s50, 1
        %s407 = scalar_lea.sflag [#allocation4], %s406
        %s408 = sand.u32 %s50, 1
        %s409 = smul.addr %s408, 128
        %s410 = scalar_lea.vmem [#allocation3], %s409
        %p411 = pneg %p63
        %p412 = pneg %p60
        %p413 = pneg %p84
        %p414 = pneg %p81
        %p415 = pneg %p105
        %p416 = pneg %p102
        %p417 = pneg %p126
        %p418 = pneg %p123
        %p419 = pneg %p147
        %p420 = pneg %p144
        %p421 = pneg %p168
        %p422 = pneg %p165
        %p423 = pneg %p189
        %p424 = pneg %p186
        %p425 = pneg %p210
        %p426 = pneg %p207
        %p427 = pneg %p231
        %p428 = pneg %p228
        %p429 = pneg %p257
        %p430 = pneg %p254
        %s431 = sand.u32 %s244, 1
        %s432 = scalar_lea.sflag [#allocation5], %s431
        %s433 = sand.u32 %s244, 1
        %s434 = smul.addr %s433, 128
        %s435 = scalar_lea.vmem [#allocation12], %s434
        %s436 = smul.u32 16, %s32
        %s437 = smul.u32 2, %s33
        %s438 = smul.u32 16, %s32
        %p439 = scmp.eq.s32.totalorder %s33, 0
        // Predicated region
        $region77: #{tpu_custom_call.1} parent=55 // pred_check
          %p440 = pneg %p439
        $region78: #{tpu_custom_call.1} parent=55 // pred_check_branch
          %442 = sbr.rel (%p440) target = $region80
        $region79: #{tpu_custom_call.1} parent=55 // pred_region
          %443 = vst [vmem:[#allocation2] sm:$0xff] 0.0
          %444 = vst [vmem:[#allocation2 + $0x8] sm:$0xff] 0.0
          %445 = vst [vmem:[#allocation2 + $0x10] sm:$0xff] 0.0
          %446 = vst [vmem:[#allocation2 + $0x18] sm:$0xff] 0.0
          %447 = vst [vmem:[#allocation2 + $0x20] sm:$0xff] 0.0
          %448 = vst [vmem:[#allocation2 + $0x28] sm:$0xff] 0.0
          %449 = vst [vmem:[#allocation2 + $0x30] sm:$0xff] 0.0
          %450 = vst [vmem:[#allocation2 + $0x38] sm:$0xff] 0.0
          %451 = vst [vmem:[#allocation2 + $0x40] sm:$0xff] 0.0
          %452 = vst [vmem:[#allocation2 + $0x48] sm:$0xff] 0.0
          %453 = vst [vmem:[#allocation2 + $0x50] sm:$0xff] 0.0
          %454 = vst [vmem:[#allocation2 + $0x58] sm:$0xff] 0.0
          %455 = vst [vmem:[#allocation2 + $0x60] sm:$0xff] 0.0
          %456 = vst [vmem:[#allocation2 + $0x68] sm:$0xff] 0.0
          %457 = vst [vmem:[#allocation2 + $0x70] sm:$0xff] 0.0
          %458 = vst [vmem:[#allocation2 + $0x78] sm:$0xff] 0.0
        $region80: #{tpu_custom_call.1} parent=55 // pred_fallthru
          _
        %s459 = smul.u32 %s33, 256
        %s460 = sshra.s32 %s459, 3
        %s461 = sand.u32 %s459, 7
        %s462 = smul.addr %s460, 4
        %s463 = scalar_lea.vmem [#allocation6], %s462
        %v464 = vld [vmem:[%s463] sm:$0xf]
        %v465 = vld [vmem:[%s463 + $0x4] sm:$0xf]
        %v466 = vld [vmem:[%s463 + $0x8] sm:$0xf]
        %v467 = vld [vmem:[%s463 + $0xc] sm:$0xf]
        %v468 = vld [vmem:[%s463 + $0x10] sm:$0xf]
        %v469 = vld [vmem:[%s463 + $0x14] sm:$0xf]
        %v470 = vld [vmem:[%s463 + $0x18] sm:$0xf]
        %v471 = vld [vmem:[%s463 + $0x1c] sm:$0xf]
        %v472 = vld [vmem:[%s463 + $0x20] sm:$0xf]
        %v473 = vld [vmem:[%s463 + $0x24] sm:$0xf]
        %v474 = vld [vmem:[%s463 + $0x28] sm:$0xf]
        %v475 = vld [vmem:[%s463 + $0x2c] sm:$0xf]
        %v476 = vld [vmem:[%s463 + $0x30] sm:$0xf]
        %v477 = vld [vmem:[%s463 + $0x34] sm:$0xf]
        %v478 = vld [vmem:[%s463 + $0x38] sm:$0xf]
        %v479 = vld [vmem:[%s463 + $0x3c] sm:$0xf]
        %v480 = vld [vmem:[%s463 + $0x40] sm:$0xf]
        %v481 = vld [vmem:[%s463 + $0x44] sm:$0xf]
        %v482 = vld [vmem:[%s463 + $0x48] sm:$0xf]
        %v483 = vld [vmem:[%s463 + $0x4c] sm:$0xf]
        %v484 = vld [vmem:[%s463 + $0x50] sm:$0xf]
        %v485 = vld [vmem:[%s463 + $0x54] sm:$0xf]
        %v486 = vld [vmem:[%s463 + $0x58] sm:$0xf]
        %v487 = vld [vmem:[%s463 + $0x5c] sm:$0xf]
        %v488 = vld [vmem:[%s463 + $0x60] sm:$0xf]
        %v489 = vld [vmem:[%s463 + $0x64] sm:$0xf]
        %v490 = vld [vmem:[%s463 + $0x68] sm:$0xf]
        %v491 = vld [vmem:[%s463 + $0x6c] sm:$0xf]
        %v492 = vld [vmem:[%s463 + $0x70] sm:$0xf]
        %v493 = vld [vmem:[%s463 + $0x74] sm:$0xf]
        %v494 = vld [vmem:[%s463 + $0x78] sm:$0xf]
        %v495 = vld [vmem:[%s463 + $0x7c] sm:$0xf]
        %v496 = vld [vmem:[#allocation8] sm:$0xf]
        %v497 = vld [vmem:[#allocation8 + $0x4] sm:$0xf]
        %v498 = vld [vmem:[#allocation8 + $0x8] sm:$0xf]
        %v499 = vld [vmem:[#allocation8 + $0xc] sm:$0xf]
        %v500 = vld [vmem:[#allocation8 + $0x10] sm:$0xf]
        %v501 = vld [vmem:[#allocation8 + $0x14] sm:$0xf]
        %v502 = vld [vmem:[#allocation8 + $0x18] sm:$0xf]
        %v503 = vld [vmem:[#allocation8 + $0x1c] sm:$0xf]
        %v504 = vld [vmem:[#allocation8 + $0x20] sm:$0xf]
        %v505 = vld [vmem:[#allocation8 + $0x24] sm:$0xf]
        %v506 = vld [vmem:[#allocation8 + $0x28] sm:$0xf]
        %v507 = vld [vmem:[#allocation8 + $0x2c] sm:$0xf]
        %v508 = vld [vmem:[#allocation8 + $0x30] sm:$0xf]
        %v509 = vld [vmem:[#allocation8 + $0x34] sm:$0xf]
        %v510 = vld [vmem:[#allocation8 + $0x38] sm:$0xf]
        %v511 = vld [vmem:[#allocation8 + $0x3c] sm:$0xf]
        %v544 = vunpack.c.l.b16 %v464
        %v545 = vunpack.c.l.b16 %v465
        %v546 = vunpack.c.l.b16 %v466
        %v547 = vunpack.c.l.b16 %v467
        %v548 = vunpack.c.l.b16 %v468
        %v549 = vunpack.c.l.b16 %v469
        %v550 = vunpack.c.l.b16 %v470
        %v551 = vunpack.c.l.b16 %v471
        %v552 = vunpack.c.l.b16 %v472
        %v553 = vunpack.c.l.b16 %v473
        %v554 = vunpack.c.l.b16 %v474
        %v555 = vunpack.c.l.b16 %v475
        %v556 = vunpack.c.l.b16 %v476
        %v557 = vunpack.c.l.b16 %v477
        %v558 = vunpack.c.l.b16 %v478
        %v559 = vunpack.c.l.b16 %v479
        %v560 = vunpack.c.l.b16 %v480
        %v561 = vunpack.c.l.b16 %v481
        %v562 = vunpack.c.l.b16 %v482
        %v563 = vunpack.c.l.b16 %v483
        %v564 = vunpack.c.l.b16 %v484
        %v565 = vunpack.c.l.b16 %v485
        %v566 = vunpack.c.l.b16 %v486
        %v567 = vunpack.c.l.b16 %v487
        %v568 = vunpack.c.l.b16 %v488
        %v569 = vunpack.c.l.b16 %v489
        %v570 = vunpack.c.l.b16 %v490
        %v571 = vunpack.c.l.b16 %v491
        %v572 = vunpack.c.l.b16 %v492
        %v573 = vunpack.c.l.b16 %v493
        %v574 = vunpack.c.l.b16 %v494
        %v575 = vunpack.c.l.b16 %v495
        %v576 = vpack.c.b16 %v545, %v544
        %v577 = vpack.c.b16 %v547, %v546
        %v578 = vpack.c.b16 %v549, %v548
        %v579 = vpack.c.b16 %v551, %v550
        %v580 = vpack.c.b16 %v553, %v552
        %v581 = vpack.c.b16 %v555, %v554
        %v582 = vpack.c.b16 %v557, %v556
        %v583 = vpack.c.b16 %v559, %v558
        %v584 = vpack.c.b16 %v561, %v560
        %v585 = vpack.c.b16 %v563, %v562
        %v586 = vpack.c.b16 %v565, %v564
        %v587 = vpack.c.b16 %v567, %v566
        %v588 = vpack.c.b16 %v569, %v568
        %v589 = vpack.c.b16 %v571, %v570
        %v590 = vpack.c.b16 %v573, %v572
        %v591 = vpack.c.b16 %v575, %v574
        %v624 = vunpack.c.l.b16 %v496
        %v625 = vunpack.c.l.b16 %v497
        %v626 = vunpack.c.l.b16 %v498
        %v627 = vunpack.c.l.b16 %v499
        %v628 = vunpack.c.l.b16 %v500
        %v629 = vunpack.c.l.b16 %v501
        %v630 = vunpack.c.l.b16 %v502
        %v631 = vunpack.c.l.b16 %v503
        %v632 = vunpack.c.l.b16 %v504
        %v633 = vunpack.c.l.b16 %v505
        %v634 = vunpack.c.l.b16 %v506
        %v635 = vunpack.c.l.b16 %v507
        %v636 = vunpack.c.l.b16 %v508
        %v637 = vunpack.c.l.b16 %v509
        %v638 = vunpack.c.l.b16 %v510
        %v639 = vunpack.c.l.b16 %v511
        %v640 = vpack.c.b16 %v625, %v624
        %v641 = vpack.c.b16 %v627, %v626
        %v642 = vpack.c.b16 %v629, %v628
        %v643 = vpack.c.b16 %v631, %v630
        %v644 = vpack.c.b16 %v633, %v632
        %v645 = vpack.c.b16 %v635, %v634
        %v646 = vpack.c.b16 %v637, %v636
        %v647 = vpack.c.b16 %v639, %v638
        %656 = vmatpush.bf16.msra.mxu0 %v647
        %657 = vmatpush.bf16.msra.mxu0 %v646
        %658 = vmatpush.bf16.msra.mxu0 %v645
        %659 = vmatpush.bf16.msra.mxu0 %v644
        %660 = vmatpush.bf16.msra.mxu0 %v643
        %661 = vmatpush.bf16.msra.mxu0 %v642
        %662 = vmatpush.bf16.msra.mxu0 %v641
        %663 = vmatpush.bf16.msra.mxu0 %v640
        %664 = vmatmul.bf16.gmra.mxu0 %v576
        %v665 = vpop.f32.mrf.mxu0
        %v666 = vadd.f32 0.0, %v665
        %v667 = vpop.f32.mrf.mxu0
        %v668 = vadd.f32 0.0, %v667
        %669 = vmatmul.bf16.gmra.mxu0 %v577
        %v670 = vpop.f32.mrf.mxu0
        %v671 = vadd.f32 0.0, %v670
        %v672 = vpop.f32.mrf.mxu0
        %v673 = vadd.f32 0.0, %v672
        %674 = vmatmul.bf16.gmra.mxu0 %v578
        %v675 = vpop.f32.mrf.mxu0
        %v676 = vadd.f32 0.0, %v675
        %v677 = vpop.f32.mrf.mxu0
        %v678 = vadd.f32 0.0, %v677
        %679 = vmatmul.bf16.gmra.mxu0 %v579
        %v680 = vpop.f32.mrf.mxu0
        %v681 = vadd.f32 0.0, %v680
        %v682 = vpop.f32.mrf.mxu0
        %v683 = vadd.f32 0.0, %v682
        %684 = vmatmul.bf16.gmra.mxu0 %v580
        %v685 = vpop.f32.mrf.mxu0
        %v686 = vadd.f32 0.0, %v685
        %v687 = vpop.f32.mrf.mxu0
        %v688 = vadd.f32 0.0, %v687
        %689 = vmatmul.bf16.gmra.mxu0 %v581
        %v690 = vpop.f32.mrf.mxu0
        %v691 = vadd.f32 0.0, %v690
        %v692 = vpop.f32.mrf.mxu0
        %v693 = vadd.f32 0.0, %v692
        %694 = vmatmul.bf16.gmra.mxu0 %v582
        %v695 = vpop.f32.mrf.mxu0
        %v696 = vadd.f32 0.0, %v695
        %v697 = vpop.f32.mrf.mxu0
        %v698 = vadd.f32 0.0, %v697
        %699 = vmatmul.bf16.gmra.mxu0 %v583
        %v700 = vpop.f32.mrf.mxu0
        %v701 = vadd.f32 0.0, %v700
        %v702 = vpop.f32.mrf.mxu0
        %v703 = vadd.f32 0.0, %v702
        %704 = vmatmul.bf16.gmra.mxu0 %v584
        %v705 = vpop.f32.mrf.mxu0
        %v706 = vadd.f32 0.0, %v705
        %v707 = vpop.f32.mrf.mxu0
        %v708 = vadd.f32 0.0, %v707
        %709 = vmatmul.bf16.gmra.mxu0 %v585
        %v710 = vpop.f32.mrf.mxu0
        %v711 = vadd.f32 0.0, %v710
        %v712 = vpop.f32.mrf.mxu0
        %v713 = vadd.f32 0.0, %v712
        %714 = vmatmul.bf16.gmra.mxu0 %v586
        %v715 = vpop.f32.mrf.mxu0
        %v716 = vadd.f32 0.0, %v715
        %v717 = vpop.f32.mrf.mxu0
        %v718 = vadd.f32 0.0, %v717
        %719 = vmatmul.bf16.gmra.mxu0 %v587
        %v720 = vpop.f32.mrf.mxu0
        %v721 = vadd.f32 0.0, %v720
        %v722 = vpop.f32.mrf.mxu0
        %v723 = vadd.f32 0.0, %v722
        %724 = vmatmul.bf16.gmra.mxu0 %v588
        %v725 = vpop.f32.mrf.mxu0
        %v726 = vadd.f32 0.0, %v725
        %v727 = vpop.f32.mrf.mxu0
        %v728 = vadd.f32 0.0, %v727
        %729 = vmatmul.bf16.gmra.mxu0 %v589
        %v730 = vpop.f32.mrf.mxu0
        %v731 = vadd.f32 0.0, %v730
        %v732 = vpop.f32.mrf.mxu0
        %v733 = vadd.f32 0.0, %v732
        %734 = vmatmul.bf16.gmra.mxu0 %v590
        %v735 = vpop.f32.mrf.mxu0
        %v736 = vadd.f32 0.0, %v735
        %v737 = vpop.f32.mrf.mxu0
        %v738 = vadd.f32 0.0, %v737
        %739 = vmatmul.bf16.gmra.mxu0 %v591
        %v740 = vpop.f32.mrf.mxu0
        %v741 = vadd.f32 0.0, %v740
        %v742 = vpop.f32.mrf.mxu0
        %v743 = vadd.f32 0.0, %v742
        %744 = vdwg.mxu0
        %v745 = vld [vmem:[#allocation2] sm:$0xff]
        %v746 = vld [vmem:[#allocation2 + $0x8] sm:$0xff]
        %v747 = vld [vmem:[#allocation2 + $0x10] sm:$0xff]
        %v748 = vld [vmem:[#allocation2 + $0x18] sm:$0xff]
        %v749 = vld [vmem:[#allocation2 + $0x20] sm:$0xff]
        %v750 = vld [vmem:[#allocation2 + $0x28] sm:$0xff]
        %v751 = vld [vmem:[#allocation2 + $0x30] sm:$0xff]
        %v752 = vld [vmem:[#allocation2 + $0x38] sm:$0xff]
        %v753 = vld [vmem:[#allocation2 + $0x40] sm:$0xff]
        %v754 = vld [vmem:[#allocation2 + $0x48] sm:$0xff]
        %v755 = vld [vmem:[#allocation2 + $0x50] sm:$0xff]
        %v756 = vld [vmem:[#allocation2 + $0x58] sm:$0xff]
        %v757 = vld [vmem:[#allocation2 + $0x60] sm:$0xff]
        %v758 = vld [vmem:[#allocation2 + $0x68] sm:$0xff]
        %v759 = vld [vmem:[#allocation2 + $0x70] sm:$0xff]
        %v760 = vld [vmem:[#allocation2 + $0x78] sm:$0xff]
        %v761 = vld [vmem:[%s380] sm:$0xff]
        %v762 = vld [vmem:[%s380 + $0x8] sm:$0xff]
        %v763 = vld [vmem:[%s380 + $0x10] sm:$0xff]
        %v764 = vld [vmem:[%s380 + $0x18] sm:$0xff]
        %v765 = vld [vmem:[%s380 + $0x20] sm:$0xff]
        %v766 = vld [vmem:[%s380 + $0x28] sm:$0xff]
        %v767 = vld [vmem:[%s380 + $0x30] sm:$0xff]
        %v768 = vld [vmem:[%s380 + $0x38] sm:$0xff]
        %v769 = vld [vmem:[%s380 + $0x40] sm:$0xff]
        %v770 = vld [vmem:[%s380 + $0x48] sm:$0xff]
        %v771 = vld [vmem:[%s380 + $0x50] sm:$0xff]
        %v772 = vld [vmem:[%s380 + $0x58] sm:$0xff]
        %v773 = vld [vmem:[%s380 + $0x60] sm:$0xff]
        %v774 = vld [vmem:[%s380 + $0x68] sm:$0xff]
        %v775 = vld [vmem:[%s380 + $0x70] sm:$0xff]
        %v776 = vld [vmem:[%s380 + $0x78] sm:$0xff]
        %v777 = vpack.c.bf16 %v668, %v666
        %v778 = vpack.c.bf16 %v673, %v671
        %v779 = vpack.c.bf16 %v678, %v676
        %v780 = vpack.c.bf16 %v683, %v681
        %v781 = vpack.c.bf16 %v688, %v686
        %v782 = vpack.c.bf16 %v693, %v691
        %v783 = vpack.c.bf16 %v698, %v696
        %v784 = vpack.c.bf16 %v703, %v701
        %v785 = vpack.c.bf16 %v708, %v706
        %v786 = vpack.c.bf16 %v713, %v711
        %v787 = vpack.c.bf16 %v718, %v716
        %v788 = vpack.c.bf16 %v723, %v721
        %v789 = vpack.c.bf16 %v728, %v726
        %v790 = vpack.c.bf16 %v733, %v731
        %v791 = vpack.c.bf16 %v738, %v736
        %v792 = vpack.c.bf16 %v743, %v741
        %v809 = vunpack.c.l.b16 %v761
        %v810 = vunpack.c.h.b16 %v761
        %v811 = vunpack.c.l.b16 %v762
        %v812 = vunpack.c.h.b16 %v762
        %v813 = vunpack.c.l.b16 %v763
        %v814 = vunpack.c.h.b16 %v763
        %v815 = vunpack.c.l.b16 %v764
        %v816 = vunpack.c.h.b16 %v764
        %v817 = vunpack.c.l.b16 %v765
        %v818 = vunpack.c.h.b16 %v765
        %v819 = vunpack.c.l.b16 %v766
        %v820 = vunpack.c.h.b16 %v766
        %v821 = vunpack.c.l.b16 %v767
        %v822 = vunpack.c.h.b16 %v767
        %v823 = vunpack.c.l.b16 %v768
        %v824 = vunpack.c.h.b16 %v768
        %v825 = vunpack.c.l.b16 %v769
        %v826 = vunpack.c.h.b16 %v769
        %v827 = vunpack.c.l.b16 %v770
        %v828 = vunpack.c.h.b16 %v770
        %v829 = vunpack.c.l.b16 %v771
        %v830 = vunpack.c.h.b16 %v771
        %v831 = vunpack.c.l.b16 %v772
        %v832 = vunpack.c.h.b16 %v772
        %v833 = vunpack.c.l.b16 %v773
        %v834 = vunpack.c.h.b16 %v773
        %v835 = vunpack.c.l.b16 %v774
        %v836 = vunpack.c.h.b16 %v774
        %v837 = vunpack.c.l.b16 %v775
        %v838 = vunpack.c.h.b16 %v775
        %v839 = vunpack.c.l.b16 %v776
        %v840 = vunpack.c.h.b16 %v776
        %v841 = vpack.c.b16 %v811, %v809
        %v842 = vpack.c.b16 %v812, %v810
        %v843 = vpack.c.b16 %v815, %v813
        %v844 = vpack.c.b16 %v816, %v814
        %v845 = vpack.c.b16 %v819, %v817
        %v846 = vpack.c.b16 %v820, %v818
        %v847 = vpack.c.b16 %v823, %v821
        %v848 = vpack.c.b16 %v824, %v822
        %v849 = vpack.c.b16 %v827, %v825
        %v850 = vpack.c.b16 %v828, %v826
        %v851 = vpack.c.b16 %v831, %v829
        %v852 = vpack.c.b16 %v832, %v830
        %v853 = vpack.c.b16 %v835, %v833
        %v854 = vpack.c.b16 %v836, %v834
        %v855 = vpack.c.b16 %v839, %v837
        %v856 = vpack.c.b16 %v840, %v838
        %873 = vmatpush.bf16.msra.mxu0 %v784
        %874 = vmatpush.bf16.msra.mxu0 %v783
        %875 = vmatpush.bf16.msra.mxu0 %v782
        %876 = vmatpush.bf16.msra.mxu0 %v781
        %877 = vmatpush.bf16.msra.mxu0 %v780
        %878 = vmatpush.bf16.msra.mxu0 %v779
        %879 = vmatpush.bf16.msra.mxu0 %v778
        %880 = vmatpush.bf16.msra.mxu0 %v777
        %881 = vmatmul.bf16.gmra.mxu0 %v841
        %v882 = vpop.f32.mrf.mxu0
        %v883 = vadd.f32 0.0, %v882
        %v884 = vpop.f32.mrf.mxu0
        %v885 = vadd.f32 0.0, %v884
        %886 = vmatmul.bf16.gmra.mxu0 %v843
        %v887 = vpop.f32.mrf.mxu0
        %v888 = vadd.f32 0.0, %v887
        %v889 = vpop.f32.mrf.mxu0
        %v890 = vadd.f32 0.0, %v889
        %891 = vmatmul.bf16.gmra.mxu0 %v845
        %v892 = vpop.f32.mrf.mxu0
        %v893 = vadd.f32 0.0, %v892
        %v894 = vpop.f32.mrf.mxu0
        %v895 = vadd.f32 0.0, %v894
        %896 = vmatmul.bf16.gmra.mxu0 %v847
        %v897 = vpop.f32.mrf.mxu0
        %v898 = vadd.f32 0.0, %v897
        %v899 = vpop.f32.mrf.mxu0
        %v900 = vadd.f32 0.0, %v899
        %901 = vmatmul.bf16.gmra.mxu0 %v849
        %v902 = vpop.f32.mrf.mxu0
        %v903 = vadd.f32 0.0, %v902
        %v904 = vpop.f32.mrf.mxu0
        %v905 = vadd.f32 0.0, %v904
        %906 = vmatmul.bf16.gmra.mxu0 %v851
        %v907 = vpop.f32.mrf.mxu0
        %v908 = vadd.f32 0.0, %v907
        %v909 = vpop.f32.mrf.mxu0
        %v910 = vadd.f32 0.0, %v909
        %911 = vmatmul.bf16.gmra.mxu0 %v853
        %v912 = vpop.f32.mrf.mxu0
        %v913 = vadd.f32 0.0, %v912
        %v914 = vpop.f32.mrf.mxu0
        %v915 = vadd.f32 0.0, %v914
        %916 = vmatmul.bf16.gmra.mxu0 %v855
        %v917 = vpop.f32.mrf.mxu0
        %v918 = vadd.f32 0.0, %v917
        %v919 = vpop.f32.mrf.mxu0
        %v920 = vadd.f32 0.0, %v919
        %921 = vdwg.mxu0
        %922 = vmatpush.bf16.msra.mxu0 %v792
        %923 = vmatpush.bf16.msra.mxu0 %v791
        %924 = vmatpush.bf16.msra.mxu0 %v790
        %925 = vmatpush.bf16.msra.mxu0 %v789
        %926 = vmatpush.bf16.msra.mxu0 %v788
        %927 = vmatpush.bf16.msra.mxu0 %v787
        %928 = vmatpush.bf16.msra.mxu0 %v786
        %929 = vmatpush.bf16.msra.mxu0 %v785
        %930 = vmatmul.bf16.gmra.mxu0 %v842
        %v931 = vpop.f32.mrf.mxu0
        %v932 = vadd.f32 %v883, %v931
        %v933 = vpop.f32.mrf.mxu0
        %v934 = vadd.f32 %v885, %v933
        %935 = vmatmul.bf16.gmra.mxu0 %v844
        %v936 = vpop.f32.mrf.mxu0
        %v937 = vadd.f32 %v888, %v936
        %v938 = vpop.f32.mrf.mxu0
        %v939 = vadd.f32 %v890, %v938
        %940 = vmatmul.bf16.gmra.mxu0 %v846
        %v941 = vpop.f32.mrf.mxu0
        %v942 = vadd.f32 %v893, %v941
        %v943 = vpop.f32.mrf.mxu0
        %v944 = vadd.f32 %v895, %v943
        %945 = vmatmul.bf16.gmra.mxu0 %v848
        %v946 = vpop.f32.mrf.mxu0
        %v947 = vadd.f32 %v898, %v946
        %v948 = vpop.f32.mrf.mxu0
        %v949 = vadd.f32 %v900, %v948
        %950 = vmatmul.bf16.gmra.mxu0 %v850
        %v951 = vpop.f32.mrf.mxu0
        %v952 = vadd.f32 %v903, %v951
        %v953 = vpop.f32.mrf.mxu0
        %v954 = vadd.f32 %v905, %v953
        %955 = vmatmul.bf16.gmra.mxu0 %v852
        %v956 = vpop.f32.mrf.mxu0
        %v957 = vadd.f32 %v908, %v956
        %v958 = vpop.f32.mrf.mxu0
        %v959 = vadd.f32 %v910, %v958
        %960 = vmatmul.bf16.gmra.mxu0 %v854
        %v961 = vpop.f32.mrf.mxu0
        %v962 = vadd.f32 %v913, %v961
        %v963 = vpop.f32.mrf.mxu0
        %v964 = vadd.f32 %v915, %v963
        %965 = vmatmul.bf16.gmra.mxu0 %v856
        %v966 = vpop.f32.mrf.mxu0
        %v967 = vadd.f32 %v918, %v966
        %v968 = vpop.f32.mrf.mxu0
        %v969 = vadd.f32 %v920, %v968
        %970 = vdwg.mxu0
        %v971 = vadd.f32 %v745, %v932
        %v972 = vadd.f32 %v746, %v934
        %v973 = vadd.f32 %v747, %v937
        %v974 = vadd.f32 %v748, %v939
        %v975 = vadd.f32 %v749, %v942
        %v976 = vadd.f32 %v750, %v944
        %v977 = vadd.f32 %v751, %v947
        %v978 = vadd.f32 %v752, %v949
        %v979 = vadd.f32 %v753, %v952
        %v980 = vadd.f32 %v754, %v954
        %v981 = vadd.f32 %v755, %v957
        %v982 = vadd.f32 %v756, %v959
        %v983 = vadd.f32 %v757, %v962
        %v984 = vadd.f32 %v758, %v964
        %v985 = vadd.f32 %v759, %v967
        %v986 = vadd.f32 %v760, %v969
        %987 = vst [vmem:[#allocation2] sm:$0xff] %v971
        %988 = vst [vmem:[#allocation2 + $0x8] sm:$0xff] %v972
        %989 = vst [vmem:[#allocation2 + $0x10] sm:$0xff] %v973
        %990 = vst [vmem:[#allocation2 + $0x18] sm:$0xff] %v974
        %991 = vst [vmem:[#allocation2 + $0x20] sm:$0xff] %v975
        %992 = vst [vmem:[#allocation2 + $0x28] sm:$0xff] %v976
        %993 = vst [vmem:[#allocation2 + $0x30] sm:$0xff] %v977
        %994 = vst [vmem:[#allocation2 + $0x38] sm:$0xff] %v978
        %995 = vst [vmem:[#allocation2 + $0x40] sm:$0xff] %v979
        %996 = vst [vmem:[#allocation2 + $0x48] sm:$0xff] %v980
        %997 = vst [vmem:[#allocation2 + $0x50] sm:$0xff] %v981
        %998 = vst [vmem:[#allocation2 + $0x58] sm:$0xff] %v982
        %999 = vst [vmem:[#allocation2 + $0x60] sm:$0xff] %v983
        %1000 = vst [vmem:[#allocation2 + $0x68] sm:$0xff] %v984
        %1001 = vst [vmem:[#allocation2 + $0x70] sm:$0xff] %v985
        %1002 = vst [vmem:[#allocation2 + $0x78] sm:$0xff] %v986
        // Predicated region
        $region81: #{tpu_custom_call.1} parent=55 // pred_check
          %p1003 = pneg %p439
        $region82: #{tpu_custom_call.1} parent=55 // pred_check_branch
          %1005 = sbr.rel (%p1003) target = $region84
        $region83: #{tpu_custom_call.1} parent=55 // pred_region
          %v1006 = vld [vmem:[#allocation2] sm:$0xff]
          %v1007 = vld [vmem:[#allocation2 + $0x8] sm:$0xff]
          %v1008 = vld [vmem:[#allocation2 + $0x10] sm:$0xff]
          %v1009 = vld [vmem:[#allocation2 + $0x18] sm:$0xff]
          %v1010 = vld [vmem:[#allocation2 + $0x20] sm:$0xff]
          %v1011 = vld [vmem:[#allocation2 + $0x28] sm:$0xff]
          %v1012 = vld [vmem:[#allocation2 + $0x30] sm:$0xff]
          %v1013 = vld [vmem:[#allocation2 + $0x38] sm:$0xff]
          %v1014 = vld [vmem:[#allocation2 + $0x40] sm:$0xff]
          %v1015 = vld [vmem:[#allocation2 + $0x48] sm:$0xff]
          %v1016 = vld [vmem:[#allocation2 + $0x50] sm:$0xff]
          %v1017 = vld [vmem:[#allocation2 + $0x58] sm:$0xff]
          %v1018 = vld [vmem:[#allocation2 + $0x60] sm:$0xff]
          %v1019 = vld [vmem:[#allocation2 + $0x68] sm:$0xff]
          %v1020 = vld [vmem:[#allocation2 + $0x70] sm:$0xff]
          %v1021 = vld [vmem:[#allocation2 + $0x78] sm:$0xff]
          %v1022 = vld [vmem:[%s3] sm:$0x1]
          %v1024 = vperm.slane %v1022, 0
          %v1026 = vmul.f32 %v1006, %v1024
          %v1027 = vmul.f32 %v1007, %v1024
          %v1028 = vmul.f32 %v1008, %v1024
          %v1029 = vmul.f32 %v1009, %v1024
          %v1030 = vmul.f32 %v1010, %v1024
          %v1031 = vmul.f32 %v1011, %v1024
          %v1032 = vmul.f32 %v1012, %v1024
          %v1033 = vmul.f32 %v1013, %v1024
          %v1034 = vmul.f32 %v1014, %v1024
          %v1035 = vmul.f32 %v1015, %v1024
          %v1036 = vmul.f32 %v1016, %v1024
          %v1037 = vmul.f32 %v1017, %v1024
          %v1038 = vmul.f32 %v1018, %v1024
          %v1039 = vmul.f32 %v1019, %v1024
          %v1040 = vmul.f32 %v1020, %v1024
          %v1041 = vmul.f32 %v1021, %v1024
          %v1042 = vld [vmem:[%s4] sm:$0x1]
          %v1044 = vperm.slane %v1042, 0
          %v1046 = vadd.f32 %v1026, %v1044
          %v1047 = vadd.f32 %v1027, %v1044
          %v1048 = vadd.f32 %v1028, %v1044
          %v1049 = vadd.f32 %v1029, %v1044
          %v1050 = vadd.f32 %v1030, %v1044
          %v1051 = vadd.f32 %v1031, %v1044
          %v1052 = vadd.f32 %v1032, %v1044
          %v1053 = vadd.f32 %v1033, %v1044
          %v1054 = vadd.f32 %v1034, %v1044
          %v1055 = vadd.f32 %v1035, %v1044
          %v1056 = vadd.f32 %v1036, %v1044
          %v1057 = vadd.f32 %v1037, %v1044
          %v1058 = vadd.f32 %v1038, %v1044
          %v1059 = vadd.f32 %v1039, %v1044
          %v1060 = vadd.f32 %v1040, %v1044
          %v1061 = vadd.f32 %v1041, %v1044
          %v1062 = vtanh.pop %v1046
          %v1063 = vtanh.pop %v1047
          %v1064 = vtanh.pop %v1048
          %v1065 = vtanh.pop %v1049
          %v1066 = vtanh.pop %v1050
          %v1067 = vtanh.pop %v1051
          %v1068 = vtanh.pop %v1052
          %v1069 = vtanh.pop %v1053
          %v1070 = vtanh.pop %v1054
          %v1071 = vtanh.pop %v1055
          %v1072 = vtanh.pop %v1056
          %v1073 = vtanh.pop %v1057
          %v1074 = vtanh.pop %v1058
          %v1075 = vtanh.pop %v1059
          %v1076 = vtanh.pop %v1060
          %v1077 = vtanh.pop %v1061
          %v1078 = vpack.c.bf16 %v1063, %v1062
          %v1079 = vpack.c.bf16 %v1065, %v1064
          %v1080 = vpack.c.bf16 %v1067, %v1066
          %v1081 = vpack.c.bf16 %v1069, %v1068
          %v1082 = vpack.c.bf16 %v1071, %v1070
          %v1083 = vpack.c.bf16 %v1073, %v1072
          %v1084 = vpack.c.bf16 %v1075, %v1074
          %v1085 = vpack.c.bf16 %v1077, %v1076
          %v1086 = vld [vmem:[#allocation9] sm:$0xf]
          %v1087 = vld [vmem:[#allocation9 + $0x4] sm:$0xf]
          %v1088 = vld [vmem:[#allocation9 + $0x8] sm:$0xf]
          %v1089 = vld [vmem:[#allocation9 + $0xc] sm:$0xf]
          %v1090 = vld [vmem:[#allocation9 + $0x10] sm:$0xf]
          %v1091 = vld [vmem:[#allocation9 + $0x14] sm:$0xf]
          %v1092 = vld [vmem:[#allocation9 + $0x18] sm:$0xf]
          %v1093 = vld [vmem:[#allocation9 + $0x1c] sm:$0xf]
          %v1094 = vld [vmem:[#allocation9 + $0x20] sm:$0xf]
          %v1095 = vld [vmem:[#allocation9 + $0x24] sm:$0xf]
          %v1096 = vld [vmem:[#allocation9 + $0x28] sm:$0xf]
          %v1097 = vld [vmem:[#allocation9 + $0x2c] sm:$0xf]
          %v1098 = vld [vmem:[#allocation9 + $0x30] sm:$0xf]
          %v1099 = vld [vmem:[#allocation9 + $0x34] sm:$0xf]
          %v1100 = vld [vmem:[#allocation9 + $0x38] sm:$0xf]
          %v1101 = vld [vmem:[#allocation9 + $0x3c] sm:$0xf]
          %v1102 = vld [vmem:[%s6] sm:$0x1]
          %v1104 = vperm.slane %v1102, 0
          %v1122 = vunpack.c.l.b16 %v1086
          %v1123 = vunpack.c.l.b16 %v1087
          %v1124 = vunpack.c.l.b16 %v1088
          %v1125 = vunpack.c.l.b16 %v1089
          %v1126 = vunpack.c.l.b16 %v1090
          %v1127 = vunpack.c.l.b16 %v1091
          %v1128 = vunpack.c.l.b16 %v1092
          %v1129 = vunpack.c.l.b16 %v1093
          %v1130 = vunpack.c.l.b16 %v1094
          %v1131 = vunpack.c.l.b16 %v1095
          %v1132 = vunpack.c.l.b16 %v1096
          %v1133 = vunpack.c.l.b16 %v1097
          %v1134 = vunpack.c.l.b16 %v1098
          %v1135 = vunpack.c.l.b16 %v1099
          %v1136 = vunpack.c.l.b16 %v1100
          %v1137 = vunpack.c.l.b16 %v1101
          %v1138 = vpack.c.b16 %v1123, %v1122
          %v1139 = vpack.c.b16 %v1125, %v1124
          %v1140 = vpack.c.b16 %v1127, %v1126
          %v1141 = vpack.c.b16 %v1129, %v1128
          %v1142 = vpack.c.b16 %v1131, %v1130
          %v1143 = vpack.c.b16 %v1133, %v1132
          %v1144 = vpack.c.b16 %v1135, %v1134
          %v1145 = vpack.c.b16 %v1137, %v1136
          %1154 = vmatpush.bf16.msra.mxu0 %v1145
          %1155 = vmatpush.bf16.msra.mxu0 %v1144
          %1156 = vmatpush.bf16.msra.mxu0 %v1143
          %1157 = vmatpush.bf16.msra.mxu0 %v1142
          %1158 = vmatpush.bf16.msra.mxu0 %v1141
          %1159 = vmatpush.bf16.msra.mxu0 %v1140
          %1160 = vmatpush.bf16.msra.mxu0 %v1139
          %1161 = vmatpush.bf16.msra.mxu0 %v1138
          %1162 = vmatmul.bf16.gmra.mxu0 %v1078
          %v1163 = vpop.f32.mrf.mxu0
          %v1164 = vadd.f32 %v1104, %v1163
          %v1165 = vpop.f32.mrf.mxu0
          %v1166 = vadd.f32 %v1104, %v1165
          %1167 = vmatmul.bf16.gmra.mxu0 %v1079
          %v1168 = vpop.f32.mrf.mxu0
          %v1169 = vadd.f32 %v1104, %v1168
          %v1170 = vpop.f32.mrf.mxu0
          %v1171 = vadd.f32 %v1104, %v1170
          %1172 = vmatmul.bf16.gmra.mxu0 %v1080
          %v1173 = vpop.f32.mrf.mxu0
          %v1174 = vadd.f32 %v1104, %v1173
          %v1175 = vpop.f32.mrf.mxu0
          %v1176 = vadd.f32 %v1104, %v1175
          %1177 = vmatmul.bf16.gmra.mxu0 %v1081
          %v1178 = vpop.f32.mrf.mxu0
          %v1179 = vadd.f32 %v1104, %v1178
          %v1180 = vpop.f32.mrf.mxu0
          %v1181 = vadd.f32 %v1104, %v1180
          %1182 = vmatmul.bf16.gmra.mxu0 %v1082
          %v1183 = vpop.f32.mrf.mxu0
          %v1184 = vadd.f32 %v1104, %v1183
          %v1185 = vpop.f32.mrf.mxu0
          %v1186 = vadd.f32 %v1104, %v1185
          %1187 = vmatmul.bf16.gmra.mxu0 %v1083
          %v1188 = vpop.f32.mrf.mxu0
          %v1189 = vadd.f32 %v1104, %v1188
          %v1190 = vpop.f32.mrf.mxu0
          %v1191 = vadd.f32 %v1104, %v1190
          %1192 = vmatmul.bf16.gmra.mxu0 %v1084
          %v1193 = vpop.f32.mrf.mxu0
          %v1194 = vadd.f32 %v1104, %v1193
          %v1195 = vpop.f32.mrf.mxu0
          %v1196 = vadd.f32 %v1104, %v1195
          %1197 = vmatmul.bf16.gmra.mxu0 %v1085
          %v1198 = vpop.f32.mrf.mxu0
          %v1199 = vadd.f32 %v1104, %v1198
          %v1200 = vpop.f32.mrf.mxu0
          %v1201 = vadd.f32 %v1104, %v1200
          %1202 = vdwg.mxu0
          %v1203 = vtanh.pop %v1164
          %v1204 = vtanh.pop %v1166
          %v1205 = vtanh.pop %v1169
          %v1206 = vtanh.pop %v1171
          %v1207 = vtanh.pop %v1174
          %v1208 = vtanh.pop %v1176
          %v1209 = vtanh.pop %v1179
          %v1210 = vtanh.pop %v1181
          %v1211 = vtanh.pop %v1184
          %v1212 = vtanh.pop %v1186
          %v1213 = vtanh.pop %v1189
          %v1214 = vtanh.pop %v1191
          %v1215 = vtanh.pop %v1194
          %v1216 = vtanh.pop %v1196
          %v1217 = vtanh.pop %v1199
          %v1218 = vtanh.pop %v1201
          %v1219 = vpack.c.bf16 %v1204, %v1203
          %v1220 = vpack.c.bf16 %v1206, %v1205
          %v1221 = vpack.c.bf16 %v1208, %v1207
          %v1222 = vpack.c.bf16 %v1210, %v1209
          %v1223 = vpack.c.bf16 %v1212, %v1211
          %v1224 = vpack.c.bf16 %v1214, %v1213
          %v1225 = vpack.c.bf16 %v1216, %v1215
          %v1226 = vpack.c.bf16 %v1218, %v1217
          %v1227 = vld [vmem:[#allocation11] sm:$0xf]
          %v1228 = vld [vmem:[#allocation11 + $0x4] sm:$0xf]
          %v1229 = vld [vmem:[#allocation11 + $0x8] sm:$0xf]
          %v1230 = vld [vmem:[#allocation11 + $0xc] sm:$0xf]
          %v1231 = vld [vmem:[#allocation11 + $0x10] sm:$0xf]
          %v1232 = vld [vmem:[#allocation11 + $0x14] sm:$0xf]
          %v1233 = vld [vmem:[#allocation11 + $0x18] sm:$0xf]
          %v1234 = vld [vmem:[#allocation11 + $0x1c] sm:$0xf]
          %v1235 = vld [vmem:[#allocation11 + $0x20] sm:$0xf]
          %v1236 = vld [vmem:[#allocation11 + $0x24] sm:$0xf]
          %v1237 = vld [vmem:[#allocation11 + $0x28] sm:$0xf]
          %v1238 = vld [vmem:[#allocation11 + $0x2c] sm:$0xf]
          %v1239 = vld [vmem:[#allocation11 + $0x30] sm:$0xf]
          %v1240 = vld [vmem:[#allocation11 + $0x34] sm:$0xf]
          %v1241 = vld [vmem:[#allocation11 + $0x38] sm:$0xf]
          %v1242 = vld [vmem:[#allocation11 + $0x3c] sm:$0xf]
          %v1243 = vld [vmem:[%s8] sm:$0x1]
          %v1245 = vperm.slane %v1243, 0
          %v1263 = vunpack.c.l.b16 %v1227
          %v1264 = vunpack.c.l.b16 %v1228
          %v1265 = vunpack.c.l.b16 %v1229
          %v1266 = vunpack.c.l.b16 %v1230
          %v1267 = vunpack.c.l.b16 %v1231
          %v1268 = vunpack.c.l.b16 %v1232
          %v1269 = vunpack.c.l.b16 %v1233
          %v1270 = vunpack.c.l.b16 %v1234
          %v1271 = vunpack.c.l.b16 %v1235
          %v1272 = vunpack.c.l.b16 %v1236
          %v1273 = vunpack.c.l.b16 %v1237
          %v1274 = vunpack.c.l.b16 %v1238
          %v1275 = vunpack.c.l.b16 %v1239
          %v1276 = vunpack.c.l.b16 %v1240
          %v1277 = vunpack.c.l.b16 %v1241
          %v1278 = vunpack.c.l.b16 %v1242
          %v1279 = vpack.c.b16 %v1264, %v1263
          %v1280 = vpack.c.b16 %v1266, %v1265
          %v1281 = vpack.c.b16 %v1268, %v1267
          %v1282 = vpack.c.b16 %v1270, %v1269
          %v1283 = vpack.c.b16 %v1272, %v1271
          %v1284 = vpack.c.b16 %v1274, %v1273
          %v1285 = vpack.c.b16 %v1276, %v1275
          %v1286 = vpack.c.b16 %v1278, %v1277
          %1295 = vmatpush.bf16.msra.mxu0 %v1286
          %1296 = vmatpush.bf16.msra.mxu0 %v1285
          %1297 = vmatpush.bf16.msra.mxu0 %v1284
          %1298 = vmatpush.bf16.msra.mxu0 %v1283
          %1299 = vmatpush.bf16.msra.mxu0 %v1282
          %1300 = vmatpush.bf16.msra.mxu0 %v1281
          %1301 = vmatpush.bf16.msra.mxu0 %v1280
          %1302 = vmatpush.bf16.msra.mxu0 %v1279
          %1303 = vmatmul.bf16.gmra.mxu0 %v1219
          %v1304 = vpop.f32.mrf.mxu0
          %v1305 = vadd.f32 %v1245, %v1304
          %v1306 = vpop.f32.mrf.mxu0
          %v1307 = vadd.f32 %v1245, %v1306
          %1308 = vmatmul.bf16.gmra.mxu0 %v1220
          %v1309 = vpop.f32.mrf.mxu0
          %v1310 = vadd.f32 %v1245, %v1309
          %v1311 = vpop.f32.mrf.mxu0
          %v1312 = vadd.f32 %v1245, %v1311
          %1313 = vmatmul.bf16.gmra.mxu0 %v1221
          %v1314 = vpop.f32.mrf.mxu0
          %v1315 = vadd.f32 %v1245, %v1314
          %v1316 = vpop.f32.mrf.mxu0
          %v1317 = vadd.f32 %v1245, %v1316
          %1318 = vmatmul.bf16.gmra.mxu0 %v1222
          %v1319 = vpop.f32.mrf.mxu0
          %v1320 = vadd.f32 %v1245, %v1319
          %v1321 = vpop.f32.mrf.mxu0
          %v1322 = vadd.f32 %v1245, %v1321
          %1323 = vmatmul.bf16.gmra.mxu0 %v1223
          %v1324 = vpop.f32.mrf.mxu0
          %v1325 = vadd.f32 %v1245, %v1324
          %v1326 = vpop.f32.mrf.mxu0
          %v1327 = vadd.f32 %v1245, %v1326
          %1328 = vmatmul.bf16.gmra.mxu0 %v1224
          %v1329 = vpop.f32.mrf.mxu0
          %v1330 = vadd.f32 %v1245, %v1329
          %v1331 = vpop.f32.mrf.mxu0
          %v1332 = vadd.f32 %v1245, %v1331
          %1333 = vmatmul.bf16.gmra.mxu0 %v1225
          %v1334 = vpop.f32.mrf.mxu0
          %v1335 = vadd.f32 %v1245, %v1334
          %v1336 = vpop.f32.mrf.mxu0
          %v1337 = vadd.f32 %v1245, %v1336
          %1338 = vmatmul.bf16.gmra.mxu0 %v1226
          %v1339 = vpop.f32.mrf.mxu0
          %v1340 = vadd.f32 %v1245, %v1339
          %v1341 = vpop.f32.mrf.mxu0
          %v1342 = vadd.f32 %v1245, %v1341
          %1343 = vdwg.mxu0
          %1344 = vst [vmem:[%s435] sm:$0xff] %v1305
          %1345 = vst [vmem:[%s435 + $0x8] sm:$0xff] %v1307
          %1346 = vst [vmem:[%s435 + $0x10] sm:$0xff] %v1310
          %1347 = vst [vmem:[%s435 + $0x18] sm:$0xff] %v1312
          %1348 = vst [vmem:[%s435 + $0x20] sm:$0xff] %v1315
          %1349 = vst [vmem:[%s435 + $0x28] sm:$0xff] %v1317
          %1350 = vst [vmem:[%s435 + $0x30] sm:$0xff] %v1320
          %1351 = vst [vmem:[%s435 + $0x38] sm:$0xff] %v1322
          %1352 = vst [vmem:[%s435 + $0x40] sm:$0xff] %v1325
          %1353 = vst [vmem:[%s435 + $0x48] sm:$0xff] %v1327
          %1354 = vst [vmem:[%s435 + $0x50] sm:$0xff] %v1330
          %1355 = vst [vmem:[%s435 + $0x58] sm:$0xff] %v1332
          %1356 = vst [vmem:[%s435 + $0x60] sm:$0xff] %v1335
          %1357 = vst [vmem:[%s435 + $0x68] sm:$0xff] %v1337
          %1358 = vst [vmem:[%s435 + $0x70] sm:$0xff] %v1340
          %1359 = vst [vmem:[%s435 + $0x78] sm:$0xff] %v1342
        $region84: #{tpu_custom_call.1} parent=55 // pred_fallthru
          _
        %s1360 = sand.u32 %s244, 1
        %s1361 = scalar_lea.sflag [#allocation5], %s1360
        %s1362 = sand.u32 %s244, 1
        %s1363 = smul.addr %s1362, 128
        %s1364 = scalar_lea.vmem [#allocation12], %s1363
        // Predicated region
        $region85: #{tpu_custom_call.1} parent=55 // pred_check
          %p1365 = pneg %p254
        $region86: #{tpu_custom_call.1} parent=55 // pred_check_branch
          %1367 = sbr.rel (%p1365) target = $region88
        $region87: #{tpu_custom_call.1} parent=55 // pred_region
          %s1368 = smul.u32 16, %s32
          %1370 = vsyncadd %s1361, 0
          %s1371 = smul.addr %s1368, 8
          %s1372 = scalar_lea.hbm %s9, %s1371
          %s1373 = sshll.u32 %s1364, 4
          %s1374 = int_to_ptr.vmem [resolvable:$true] %s1373
          %s1375 = sshll.u32 %s1372, 4
          %s1376 = int_to_ptr.hbm [resolvable:$true] %s1375
          %1381 = dma.vmem_to_hbm [thread:$0]  %s1374, 2048, %s1376, %s1361, 128, 128, 8
        $region88: #{tpu_custom_call.1} parent=55 // pred_fallthru
          _
      $region56: #{tpu_custom_call.1} parent=5 // pred_fallthru
        _
      %p1382 = scmp.le.s32.totalorder 2, %s23
      // Predicated region
      $region89: #{tpu_custom_call.1} parent=5 // pred_check
        %p1383 = pneg %p1382
      $region90: #{tpu_custom_call.1} parent=5 // pred_check_branch
        %1385 = sbr.rel (%p1383) target = $region92
      $region91: #{tpu_custom_call.1} parent=5 // pred_region
        %s1386 = ssub.s32 %s23, 2
        // Predicated region
        $region93: #{tpu_custom_call.1} parent=91 // pred_check
          %p1387 = pneg %p260
        $region94: #{tpu_custom_call.1} parent=91 // pred_check_branch
          %1389 = sbr.rel (%p1387) target = $region96
        $region95: #{tpu_custom_call.1} parent=91 // pred_region
          %s1390 = sand.u32 %s245, 1
          %s1391 = scalar_lea.sflag [#allocation5], %s1390
          %s1392 = sand.u32 %s245, 1
          %s1393 = smul.addr %s1392, 128
          %s1394 = scalar_lea.vmem [#allocation12], %s1393
          %1396 = dma.done %s1391, 2048
        $region96: #{tpu_custom_call.1} parent=91 // pred_fallthru
          _
      $region92: #{tpu_custom_call.1} parent=5 // pred_fallthru
        _
    $region6: #{tpu_custom_call.1} parent=1 // loop_footer
      %s27 = sadd.s32 1, %s23
    $region7: #{tpu_custom_call.1} parent=1 // loop_footer_branch
      %22 = sbr.rel target = $region3
    $region8: #{tpu_custom_call.1} parent=1 // loop_exit
      _
    %1397 = vsyncpa [#allocation4], 1
    %s1398 = scalar_lea.sflag [#allocation4], 1
    %1399 = vsyncpa %s1398, 1
    %1400 = vsyncpa [#allocation7], 1
    %1401 = vsyncpa [#allocation10], 1
    %1402 = vsyncpa [#allocation5], 1
    %s1403 = scalar_lea.sflag [#allocation5], 1
    %1404 = vsyncpa %s1403, 1

</llo_original>
